<compile_context>
chip_gen: v5e
topology: v5e:2x2
jax: 0.10.0
libtpu: 0.0.40
codegen_flags: <defaults>
</compile_context>

<pallas_src>
import jax
import jax.numpy as jnp
from jax import lax
from jax.experimental import pallas as pl
from jax.experimental.pallas import tpu as pltpu


# ------------------------------ fused kernel --------------------------------

def _net_kernel(x_ref, m1_ref, b1_ref, sl1_ref, sr1_ref,
                m2_ref, b2_ref, sl2_ref, sr2_ref,
                w1p_ref, fb1_ref, w2p_ref, fb2_ref, w3p_ref, fb3_ref,
                o_ref):
    f32 = jnp.float32

    def dot(a, b):
        return jnp.dot(a, b, preferred_element_type=f32)

    x = x_ref[0, 0]                                        # (32, 32)

    # ---- conv1 (1 -> 6, 3x3): channels packed on lanes, y1[i, co*30 + j] ----
    y1 = (dot(x[0:30, :], m1_ref[0]) + dot(x[1:31, :], m1_ref[1])
          + dot(x[2:32, :], m1_ref[2]) + b1_ref[...])       # (30, 180)
    y1 = jnp.maximum(y1, 0.0)
    # 2x2 / stride-2 max-pool for all channels at once
    a1 = jnp.maximum(y1[:, :-1], y1[:, 1:])                 # (30, 179)
    v1 = jnp.maximum(a1[:-1, :], a1[1:, :])                 # (29, 179)
    h1 = dot(sl1_ref[...], dot(v1, sr1_ref[...]))           # (15, 90)  [h, ci*15+w]

    # ---- conv2 (6 -> 16, 3x3): y2[i, co*13 + j] ----
    y2 = (dot(h1[0:13, :], m2_ref[0]) + dot(h1[1:14, :], m2_ref[1])
          + dot(h1[2:15, :], m2_ref[2]) + b2_ref[...])       # (13, 208)
    y2 = jnp.maximum(y2, 0.0)
    a2 = jnp.maximum(y2[:, :-1], y2[:, 1:])                 # (13, 207)
    v2 = jnp.maximum(a2[:-1, :], a2[1:, :])                 # (12, 207)
    h2 = dot(sl2_ref[...], dot(v2, sr2_ref[...]))           # (6, 96)   [h, c*6+w]

    # ---- fc1 (576 -> 120) + ReLU ----
    f1 = fb1_ref[...]                                       # (1, 120)
    for h in range(6):
        f1 = f1 + dot(h2[h:h + 1, :], w1p_ref[h])
    f1 = jnp.maximum(f1, 0.0)

    # ---- fc2 (120 -> 84) + ReLU, fc3 (84 -> 10) ----
    f2 = jnp.maximum(dot(f1, w2p_ref[...]) + fb2_ref[...], 0.0)   # (1, 84)
    o_ref[0] = dot(f2, w3p_ref[...]) + fb3_ref[...]               # (1, 10)


# ---------------------------- host-side weight prep --------------------------

def _sel_rows(n_out, n_in):
    """S[i, k] = 1 iff k == 2*i (left-multiply picks even rows)."""
    i = jnp.arange(n_out)[:, None]
    k = jnp.arange(n_in)[None, :]
    return (k == 2 * i).astype(jnp.float32)


def _sel_cols(n_in, n_ch, band_in, band_out):
    """S[p, co*band_out + t] = 1 iff p == co*band_in + 2*t (picks even cols per channel band)."""
    p = jnp.arange(n_in)[:, None]
    col = jnp.arange(n_ch * band_out)[None, :]
    return (p == (col // band_out) * band_in + 2 * (col % band_out)).astype(jnp.float32)


def prepare_params(params):
    """One-time host-side rearrangement so the kernel is pure matmul + max."""
    f32 = jnp.float32
    w1 = params["conv1_w"].astype(f32).reshape(6, 3, 3)          # (co, kh, kw)
    w2 = params["conv2_w"].astype(f32)                           # (co, ci, kh, kw)

    # Banded conv matrices: conv = sum_kh  x[kh:kh+H', :] @ m[kh]
    eye1 = jnp.stack([jnp.eye(32, 30, k=-kw, dtype=f32) for kw in range(3)])   # (3,32,30)
    m1 = jnp.einsum("chw,wpj->hpcj", w1, eye1).reshape(3, 32, 6 * 30)          # (3,32,180)
    eye2 = jnp.stack([jnp.eye(15, 13, k=-kw, dtype=f32) for kw in range(3)])   # (3,15,13)
    m2 = jnp.einsum("oihw,wpj->hipoj", w2, eye2).reshape(3, 6 * 15, 16 * 13)   # (3,90,208)

    # fc1 weights in the kernel's (h, c*6+w, o) layout (PyTorch flatten is c*36+h*6+w)
    fc1 = params["fc1_w"].astype(f32).reshape(120, 16, 6, 6)     # (o, c, h, w)
    w1p = jnp.transpose(fc1, (2, 1, 3, 0)).reshape(6, 96, 120)

    return dict(
        m1=m1,
        b1row=jnp.repeat(params["conv1_b"].astype(f32), 30)[None, :],   # (1, 180)
        sl1=_sel_rows(15, 29), sr1=_sel_cols(179, 6, 30, 15),
        m2=m2,
        b2row=jnp.repeat(params["conv2_b"].astype(f32), 13)[None, :],   # (1, 208)
        sl2=_sel_rows(6, 12), sr2=_sel_cols(207, 16, 13, 6),
        w1p=w1p, fb1=params["fc1_b"].astype(f32)[None, :],
        w2p=params["fc2_w"].astype(f32).T, fb2=params["fc2_b"].astype(f32)[None, :],
        w3p=params["fc3_w"].astype(f32).T, fb3=params["fc3_b"].astype(f32)[None, :],
    )


# ------------------------------ pallas wrapper -------------------------------

_WEIGHT_ORDER = ("m1", "b1row", "sl1", "sr1", "m2", "b2row", "sl2", "sr2",
                 "w1p", "fb1", "w2p", "fb2", "w3p", "fb3")


def net_forward(x_nchw, p):
    n = x_nchw.shape[0]
    weights = [p[k] for k in _WEIGHT_ORDER]

    def resident(arr):   # full-array VMEM block, same block every grid step
        return pl.BlockSpec(arr.shape, lambda b, _nd=arr.ndim: (0,) * _nd)

    out = pl.pallas_call(
        _net_kernel,
        out_shape=jax.ShapeDtypeStruct((n, 1, 10), jnp.float32),
        grid=(n,),
        in_specs=[pl.BlockSpec((1, 1, 32, 32), lambda b: (b, 0, 0, 0))]
                 + [resident(w) for w in weights],
        out_specs=pl.BlockSpec((1, 1, 10), lambda b: (b, 0, 0)),
        compiler_params=pltpu.CompilerParams(
            dimension_semantics=("parallel",)),
    )(x_nchw, *weights)
    return out.reshape(n, 10)


# ----------------------------- reference / init ------------------------------

def net_reference(x, params):
    """Pure-JAX reference matching the PyTorch module semantics."""
    y = lax.conv_general_dilated(x, params["conv1_w"], (1, 1), "VALID",
                                 dimension_numbers=("NCHW", "OIHW", "NCHW"))
    y = jnp.maximum(y + params["conv1_b"][None, :, None, None], 0.0)
    y = lax.reduce_window(y, -jnp.inf, lax.max, (1, 1, 2, 2), (1, 1, 2, 2), "VALID")
    y = lax.conv_general_dilated(y, params["conv2_w"], (1, 1), "VALID",
                                 dimension_numbers=("NCHW", "OIHW", "NCHW"))
    y = jnp.maximum(y + params["conv2_b"][None, :, None, None], 0.0)
    y = lax.reduce_window(y, -jnp.inf, lax.max, (1, 1, 2, 2), (1, 1, 2, 2), "VALID")
    y = y.reshape(y.shape[0], -1)
    y = jnp.maximum(y @ params["fc1_w"].T + params["fc1_b"], 0.0)
    y = jnp.maximum(y @ params["fc2_w"].T + params["fc2_b"], 0.0)
    return y @ params["fc3_w"].T + params["fc3_b"]


def init_params(key):
    """Deterministic synthetic init, PyTorch-style U(-1/sqrt(fan_in), 1/sqrt(fan_in))."""
    ks = jax.random.split(key, 10)

    def u(k, shape, fan_in):
        bound = 1.0 / (fan_in ** 0.5)
        return jax.random.uniform(k, shape, jnp.float32, -bound, bound)

    return {
        "conv1_w": u(ks[0], (6, 1, 3, 3), 9),
        "conv1_b": u(ks[1], (6,), 9),
        "conv2_w": u(ks[2], (16, 6, 3, 3), 54),
        "conv2_b": u(ks[3], (16,), 54),
        "fc1_w": u(ks[4], (120, 576), 576),
        "fc1_b": u(ks[5], (120,), 576),
        "fc2_w": u(ks[6], (84, 120), 120),
        "fc2_b": u(ks[7], (84,), 120),
        "fc3_w": u(ks[8], (10, 84), 84),
        "fc3_b": u(ks[9], (10,), 84),
    }


if __name__ == "__main__":
    key = jax.random.PRNGKey(0)
    k_params, k_x = jax.random.split(key)
    params = init_params(k_params)
    prep = prepare_params(params)

    # Net's fc1 (16*6*6) implies 32x32 single-channel input; use batch=2.
    x = jax.random.normal(k_x, (2, 1, 32, 32), dtype=jnp.float32)

    fwd = jax.jit(net_forward)
    out = jax.block_until_ready(fwd(x, prep))
    assert out.shape == (2, 10), out.shape

    ref = jax.block_until_ready(net_reference(x, params))
    err = float(jnp.max(jnp.abs(out - ref)))
    assert err < 5e-2, f"max abs error vs reference: {err}"

    print("KERNEL_OK")
</pallas_src>

<mosaic_0001>
module attributes {stable_mosaic.version = 11 : i64} {
  func.func @_net_kernel(%arg0: i32, %arg1: memref<1x1x32x32xf32, #tpu.memory_space<vmem>>, %arg2: memref<3x32x180xf32, #tpu.memory_space<vmem>>, %arg3: memref<1x180xf32, #tpu.memory_space<vmem>>, %arg4: memref<15x29xf32, #tpu.memory_space<vmem>>, %arg5: memref<179x90xf32, #tpu.memory_space<vmem>>, %arg6: memref<3x90x208xf32, #tpu.memory_space<vmem>>, %arg7: memref<1x208xf32, #tpu.memory_space<vmem>>, %arg8: memref<6x12xf32, #tpu.memory_space<vmem>>, %arg9: memref<207x96xf32, #tpu.memory_space<vmem>>, %arg10: memref<6x96x120xf32, #tpu.memory_space<vmem>>, %arg11: memref<1x120xf32, #tpu.memory_space<vmem>>, %arg12: memref<120x84xf32, #tpu.memory_space<vmem>>, %arg13: memref<1x84xf32, #tpu.memory_space<vmem>>, %arg14: memref<84x10xf32, #tpu.memory_space<vmem>>, %arg15: memref<1x10xf32, #tpu.memory_space<vmem>>, %arg16: memref<1x1x10xf32, #tpu.memory_space<vmem>>) attributes {dimension_semantics = [#tpu.dimension_semantics<parallel>], iteration_bounds = array<i64: 2>, scalar_prefetch = 0 : i64, scratch_operands = 0 : i64, tpu.core_type = #tpu.core_type<tc>, window_params = [{transform_indices = @transform_0, window_bounds = array<i64: 1, 1, 32, 32>}, {pipeline_mode = #tpu.pipeline_mode<synchronous>, transform_indices = @transform_1, window_bounds = array<i64: 3, 32, 180>}, {pipeline_mode = #tpu.pipeline_mode<synchronous>, transform_indices = @transform_2, window_bounds = array<i64: 1, 180>}, {pipeline_mode = #tpu.pipeline_mode<synchronous>, transform_indices = @transform_3, window_bounds = array<i64: 15, 29>}, {pipeline_mode = #tpu.pipeline_mode<synchronous>, transform_indices = @transform_4, window_bounds = array<i64: 179, 90>}, {pipeline_mode = #tpu.pipeline_mode<synchronous>, transform_indices = @transform_5, window_bounds = array<i64: 3, 90, 208>}, {pipeline_mode = #tpu.pipeline_mode<synchronous>, transform_indices = @transform_6, window_bounds = array<i64: 1, 208>}, {pipeline_mode = #tpu.pipeline_mode<synchronous>, transform_indices = @transform_7, window_bounds = array<i64: 6, 12>}, {pipeline_mode = #tpu.pipeline_mode<synchronous>, transform_indices = @transform_8, window_bounds = array<i64: 207, 96>}, {pipeline_mode = #tpu.pipeline_mode<synchronous>, transform_indices = @transform_9, window_bounds = array<i64: 6, 96, 120>}, {pipeline_mode = #tpu.pipeline_mode<synchronous>, transform_indices = @transform_10, window_bounds = array<i64: 1, 120>}, {pipeline_mode = #tpu.pipeline_mode<synchronous>, transform_indices = @transform_11, window_bounds = array<i64: 120, 84>}, {pipeline_mode = #tpu.pipeline_mode<synchronous>, transform_indices = @transform_12, window_bounds = array<i64: 1, 84>}, {pipeline_mode = #tpu.pipeline_mode<synchronous>, transform_indices = @transform_13, window_bounds = array<i64: 84, 10>}, {pipeline_mode = #tpu.pipeline_mode<synchronous>, transform_indices = @transform_14, window_bounds = array<i64: 1, 10>}, {transform_indices = @transform_15, window_bounds = array<i64: 1, 1, 10>}]} {
    %c0 = arith.constant 0 : index
    %c0_0 = arith.constant 0 : index
    %c0_1 = arith.constant 0 : index
    %c0_2 = arith.constant 0 : index
    %0 = vector.load %arg1[%c0, %c0_0, %c0_1, %c0_2] : memref<1x1x32x32xf32, #tpu.memory_space<vmem>>, vector<1x1x32x32xf32>
    %1 = vector.shape_cast %0 : vector<1x1x32x32xf32> to vector<32x32xf32>
    %2 = vector.extract_strided_slice %1 {offsets = [0, 0], sizes = [30, 32], strides = [1, 1]} : vector<32x32xf32> to vector<30x32xf32>
    %c0_3 = arith.constant 0 : index
    %c0_4 = arith.constant 0 : index
    %c0_5 = arith.constant 0 : index
    %3 = vector.load %arg2[%c0_3, %c0_4, %c0_5] : memref<3x32x180xf32, #tpu.memory_space<vmem>>, vector<1x32x180xf32>
    %4 = vector.shape_cast %3 : vector<1x32x180xf32> to vector<32x180xf32>
    %cst = arith.constant dense<0.000000e+00> : vector<30x180xf32>
    %5 = tpu.matmul %2, %4, %cst {dimension_numbers = #tpu.dot_dimension_numbers<[1], [0], [0], [1], [0, 0, 1, 1], [], []>} : vector<30x32xf32>, vector<32x180xf32>, vector<30x180xf32> -> vector<30x180xf32>
    %6 = vector.extract_strided_slice %1 {offsets = [1, 0], sizes = [30, 32], strides = [1, 1]} : vector<32x32xf32> to vector<30x32xf32>
    %c1 = arith.constant 1 : index
    %c0_6 = arith.constant 0 : index
    %c0_7 = arith.constant 0 : index
    %7 = vector.load %arg2[%c1, %c0_6, %c0_7] : memref<3x32x180xf32, #tpu.memory_space<vmem>>, vector<1x32x180xf32>
    %8 = vector.shape_cast %7 : vector<1x32x180xf32> to vector<32x180xf32>
    %cst_8 = arith.constant dense<0.000000e+00> : vector<30x180xf32>
    %9 = tpu.matmul %6, %8, %cst_8 {dimension_numbers = #tpu.dot_dimension_numbers<[1], [0], [0], [1], [0, 0, 1, 1], [], []>} : vector<30x32xf32>, vector<32x180xf32>, vector<30x180xf32> -> vector<30x180xf32>
    %10 = arith.addf %5, %9 : vector<30x180xf32>
    %11 = vector.extract_strided_slice %1 {offsets = [2, 0], sizes = [30, 32], strides = [1, 1]} : vector<32x32xf32> to vector<30x32xf32>
    %c2 = arith.constant 2 : index
    %c0_9 = arith.constant 0 : index
    %c0_10 = arith.constant 0 : index
    %12 = vector.load %arg2[%c2, %c0_9, %c0_10] : memref<3x32x180xf32, #tpu.memory_space<vmem>>, vector<1x32x180xf32>
    %13 = vector.shape_cast %12 : vector<1x32x180xf32> to vector<32x180xf32>
    %cst_11 = arith.constant dense<0.000000e+00> : vector<30x180xf32>
    %14 = tpu.matmul %11, %13, %cst_11 {dimension_numbers = #tpu.dot_dimension_numbers<[1], [0], [0], [1], [0, 0, 1, 1], [], []>} : vector<30x32xf32>, vector<32x180xf32>, vector<30x180xf32> -> vector<30x180xf32>
    %15 = arith.addf %10, %14 : vector<30x180xf32>
    %c0_12 = arith.constant 0 : index
    %c0_13 = arith.constant 0 : index
    %16 = vector.load %arg3[%c0_12, %c0_13] : memref<1x180xf32, #tpu.memory_space<vmem>>, vector<1x180xf32>
    %17 = vector.broadcast %16 : vector<1x180xf32> to vector<30x180xf32>
    %18 = arith.addf %15, %17 : vector<30x180xf32>
    %cst_14 = arith.constant 0.000000e+00 : f32
    %19 = vector.broadcast %cst_14 : f32 to vector<30x180xf32>
    %20 = arith.maximumf %18, %19 : vector<30x180xf32>
    %21 = vector.extract_strided_slice %20 {offsets = [0, 0], sizes = [30, 179], strides = [1, 1]} : vector<30x180xf32> to vector<30x179xf32>
    %22 = vector.extract_strided_slice %20 {offsets = [0, 1], sizes = [30, 179], strides = [1, 1]} : vector<30x180xf32> to vector<30x179xf32>
    %23 = arith.maximumf %21, %22 : vector<30x179xf32>
    %24 = vector.extract_strided_slice %23 {offsets = [0, 0], sizes = [29, 179], strides = [1, 1]} : vector<30x179xf32> to vector<29x179xf32>
    %25 = vector.extract_strided_slice %23 {offsets = [1, 0], sizes = [29, 179], strides = [1, 1]} : vector<30x179xf32> to vector<29x179xf32>
    %26 = arith.maximumf %24, %25 : vector<29x179xf32>
    %c0_15 = arith.constant 0 : index
    %c0_16 = arith.constant 0 : index
    %27 = vector.load %arg4[%c0_15, %c0_16] : memref<15x29xf32, #tpu.memory_space<vmem>>, vector<15x29xf32>
    %c0_17 = arith.constant 0 : index
    %c0_18 = arith.constant 0 : index
    %28 = vector.load %arg5[%c0_17, %c0_18] : memref<179x90xf32, #tpu.memory_space<vmem>>, vector<179x90xf32>
    %cst_19 = arith.constant dense<0.000000e+00> : vector<29x90xf32>
    %29 = tpu.matmul %26, %28, %cst_19 {dimension_numbers = #tpu.dot_dimension_numbers<[1], [0], [0], [1], [0, 0, 1, 1], [], []>} : vector<29x179xf32>, vector<179x90xf32>, vector<29x90xf32> -> vector<29x90xf32>
    %cst_20 = arith.constant dense<0.000000e+00> : vector<15x90xf32>
    %30 = tpu.matmul %27, %29, %cst_20 {dimension_numbers = #tpu.dot_dimension_numbers<[1], [0], [0], [1], [0, 0, 1, 1], [], []>} : vector<15x29xf32>, vector<29x90xf32>, vector<15x90xf32> -> vector<15x90xf32>
    %31 = vector.extract_strided_slice %30 {offsets = [0, 0], sizes = [13, 90], strides = [1, 1]} : vector<15x90xf32> to vector<13x90xf32>
    %c0_21 = arith.constant 0 : index
    %c0_22 = arith.constant 0 : index
    %c0_23 = arith.constant 0 : index
    %32 = vector.load %arg6[%c0_21, %c0_22, %c0_23] : memref<3x90x208xf32, #tpu.memory_space<vmem>>, vector<1x90x208xf32>
    %33 = vector.shape_cast %32 : vector<1x90x208xf32> to vector<90x208xf32>
    %cst_24 = arith.constant dense<0.000000e+00> : vector<13x208xf32>
    %34 = tpu.matmul %31, %33, %cst_24 {dimension_numbers = #tpu.dot_dimension_numbers<[1], [0], [0], [1], [0, 0, 1, 1], [], []>} : vector<13x90xf32>, vector<90x208xf32>, vector<13x208xf32> -> vector<13x208xf32>
    %35 = vector.extract_strided_slice %30 {offsets = [1, 0], sizes = [13, 90], strides = [1, 1]} : vector<15x90xf32> to vector<13x90xf32>
    %c1_25 = arith.constant 1 : index
    %c0_26 = arith.constant 0 : index
    %c0_27 = arith.constant 0 : index
    %36 = vector.load %arg6[%c1_25, %c0_26, %c0_27] : memref<3x90x208xf32, #tpu.memory_space<vmem>>, vector<1x90x208xf32>
    %37 = vector.shape_cast %36 : vector<1x90x208xf32> to vector<90x208xf32>
    %cst_28 = arith.constant dense<0.000000e+00> : vector<13x208xf32>
    %38 = tpu.matmul %35, %37, %cst_28 {dimension_numbers = #tpu.dot_dimension_numbers<[1], [0], [0], [1], [0, 0, 1, 1], [], []>} : vector<13x90xf32>, vector<90x208xf32>, vector<13x208xf32> -> vector<13x208xf32>
    %39 = arith.addf %34, %38 : vector<13x208xf32>
    %40 = vector.extract_strided_slice %30 {offsets = [2, 0], sizes = [13, 90], strides = [1, 1]} : vector<15x90xf32> to vector<13x90xf32>
    %c2_29 = arith.constant 2 : index
    %c0_30 = arith.constant 0 : index
    %c0_31 = arith.constant 0 : index
    %41 = vector.load %arg6[%c2_29, %c0_30, %c0_31] : memref<3x90x208xf32, #tpu.memory_space<vmem>>, vector<1x90x208xf32>
    %42 = vector.shape_cast %41 : vector<1x90x208xf32> to vector<90x208xf32>
    %cst_32 = arith.constant dense<0.000000e+00> : vector<13x208xf32>
    %43 = tpu.matmul %40, %42, %cst_32 {dimension_numbers = #tpu.dot_dimension_numbers<[1], [0], [0], [1], [0, 0, 1, 1], [], []>} : vector<13x90xf32>, vector<90x208xf32>, vector<13x208xf32> -> vector<13x208xf32>
    %44 = arith.addf %39, %43 : vector<13x208xf32>
    %c0_33 = arith.constant 0 : index
    %c0_34 = arith.constant 0 : index
    %45 = vector.load %arg7[%c0_33, %c0_34] : memref<1x208xf32, #tpu.memory_space<vmem>>, vector<1x208xf32>
    %46 = vector.broadcast %45 : vector<1x208xf32> to vector<13x208xf32>
    %47 = arith.addf %44, %46 : vector<13x208xf32>
    %cst_35 = arith.constant 0.000000e+00 : f32
    %48 = vector.broadcast %cst_35 : f32 to vector<13x208xf32>
    %49 = arith.maximumf %47, %48 : vector<13x208xf32>
    %50 = vector.extract_strided_slice %49 {offsets = [0, 0], sizes = [13, 207], strides = [1, 1]} : vector<13x208xf32> to vector<13x207xf32>
    %51 = vector.extract_strided_slice %49 {offsets = [0, 1], sizes = [13, 207], strides = [1, 1]} : vector<13x208xf32> to vector<13x207xf32>
    %52 = arith.maximumf %50, %51 : vector<13x207xf32>
    %53 = vector.extract_strided_slice %52 {offsets = [0, 0], sizes = [12, 207], strides = [1, 1]} : vector<13x207xf32> to vector<12x207xf32>
    %54 = vector.extract_strided_slice %52 {offsets = [1, 0], sizes = [12, 207], strides = [1, 1]} : vector<13x207xf32> to vector<12x207xf32>
    %55 = arith.maximumf %53, %54 : vector<12x207xf32>
    %c0_36 = arith.constant 0 : index
    %c0_37 = arith.constant 0 : index
    %56 = vector.load %arg8[%c0_36, %c0_37] : memref<6x12xf32, #tpu.memory_space<vmem>>, vector<6x12xf32>
    %c0_38 = arith.constant 0 : index
    %c0_39 = arith.constant 0 : index
    %57 = vector.load %arg9[%c0_38, %c0_39] : memref<207x96xf32, #tpu.memory_space<vmem>>, vector<207x96xf32>
    %cst_40 = arith.constant dense<0.000000e+00> : vector<12x96xf32>
    %58 = tpu.matmul %55, %57, %cst_40 {dimension_numbers = #tpu.dot_dimension_numbers<[1], [0], [0], [1], [0, 0, 1, 1], [], []>} : vector<12x207xf32>, vector<207x96xf32>, vector<12x96xf32> -> vector<12x96xf32>
    %cst_41 = arith.constant dense<0.000000e+00> : vector<6x96xf32>
    %59 = tpu.matmul %56, %58, %cst_41 {dimension_numbers = #tpu.dot_dimension_numbers<[1], [0], [0], [1], [0, 0, 1, 1], [], []>} : vector<6x12xf32>, vector<12x96xf32>, vector<6x96xf32> -> vector<6x96xf32>
    %c0_42 = arith.constant 0 : index
    %c0_43 = arith.constant 0 : index
    %60 = vector.load %arg11[%c0_42, %c0_43] : memref<1x120xf32, #tpu.memory_space<vmem>>, vector<1x120xf32>
    %61 = vector.extract_strided_slice %59 {offsets = [0, 0], sizes = [1, 96], strides = [1, 1]} : vector<6x96xf32> to vector<1x96xf32>
    %c0_44 = arith.constant 0 : index
    %c0_45 = arith.constant 0 : index
    %c0_46 = arith.constant 0 : index
    %62 = vector.load %arg10[%c0_44, %c0_45, %c0_46] : memref<6x96x120xf32, #tpu.memory_space<vmem>>, vector<1x96x120xf32>
    %63 = vector.shape_cast %62 : vector<1x96x120xf32> to vector<96x120xf32>
    %cst_47 = arith.constant dense<0.000000e+00> : vector<1x120xf32>
    %64 = tpu.matmul %61, %63, %cst_47 {dimension_numbers = #tpu.dot_dimension_numbers<[1], [0], [0], [1], [0, 0, 1, 1], [], []>} : vector<1x96xf32>, vector<96x120xf32>, vector<1x120xf32> -> vector<1x120xf32>
    %65 = arith.addf %60, %64 : vector<1x120xf32>
    %66 = vector.extract_strided_slice %59 {offsets = [1, 0], sizes = [1, 96], strides = [1, 1]} : vector<6x96xf32> to vector<1x96xf32>
    %c1_48 = arith.constant 1 : index
    %c0_49 = arith.constant 0 : index
    %c0_50 = arith.constant 0 : index
    %67 = vector.load %arg10[%c1_48, %c0_49, %c0_50] : memref<6x96x120xf32, #tpu.memory_space<vmem>>, vector<1x96x120xf32>
    %68 = vector.shape_cast %67 : vector<1x96x120xf32> to vector<96x120xf32>
    %cst_51 = arith.constant dense<0.000000e+00> : vector<1x120xf32>
    %69 = tpu.matmul %66, %68, %cst_51 {dimension_numbers = #tpu.dot_dimension_numbers<[1], [0], [0], [1], [0, 0, 1, 1], [], []>} : vector<1x96xf32>, vector<96x120xf32>, vector<1x120xf32> -> vector<1x120xf32>
    %70 = arith.addf %65, %69 : vector<1x120xf32>
    %71 = vector.extract_strided_slice %59 {offsets = [2, 0], sizes = [1, 96], strides = [1, 1]} : vector<6x96xf32> to vector<1x96xf32>
    %c2_52 = arith.constant 2 : index
    %c0_53 = arith.constant 0 : index
    %c0_54 = arith.constant 0 : index
    %72 = vector.load %arg10[%c2_52, %c0_53, %c0_54] : memref<6x96x120xf32, #tpu.memory_space<vmem>>, vector<1x96x120xf32>
    %73 = vector.shape_cast %72 : vector<1x96x120xf32> to vector<96x120xf32>
    %cst_55 = arith.constant dense<0.000000e+00> : vector<1x120xf32>
    %74 = tpu.matmul %71, %73, %cst_55 {dimension_numbers = #tpu.dot_dimension_numbers<[1], [0], [0], [1], [0, 0, 1, 1], [], []>} : vector<1x96xf32>, vector<96x120xf32>, vector<1x120xf32> -> vector<1x120xf32>
    %75 = arith.addf %70, %74 : vector<1x120xf32>
    %76 = vector.extract_strided_slice %59 {offsets = [3, 0], sizes = [1, 96], strides = [1, 1]} : vector<6x96xf32> to vector<1x96xf32>
    %c3 = arith.constant 3 : index
    %c0_56 = arith.constant 0 : index
    %c0_57 = arith.constant 0 : index
    %77 = vector.load %arg10[%c3, %c0_56, %c0_57] : memref<6x96x120xf32, #tpu.memory_space<vmem>>, vector<1x96x120xf32>
    %78 = vector.shape_cast %77 : vector<1x96x120xf32> to vector<96x120xf32>
    %cst_58 = arith.constant dense<0.000000e+00> : vector<1x120xf32>
    %79 = tpu.matmul %76, %78, %cst_58 {dimension_numbers = #tpu.dot_dimension_numbers<[1], [0], [0], [1], [0, 0, 1, 1], [], []>} : vector<1x96xf32>, vector<96x120xf32>, vector<1x120xf32> -> vector<1x120xf32>
    %80 = arith.addf %75, %79 : vector<1x120xf32>
    %81 = vector.extract_strided_slice %59 {offsets = [4, 0], sizes = [1, 96], strides = [1, 1]} : vector<6x96xf32> to vector<1x96xf32>
    %c4 = arith.constant 4 : index
    %c0_59 = arith.constant 0 : index
    %c0_60 = arith.constant 0 : index
    %82 = vector.load %arg10[%c4, %c0_59, %c0_60] : memref<6x96x120xf32, #tpu.memory_space<vmem>>, vector<1x96x120xf32>
    %83 = vector.shape_cast %82 : vector<1x96x120xf32> to vector<96x120xf32>
    %cst_61 = arith.constant dense<0.000000e+00> : vector<1x120xf32>
    %84 = tpu.matmul %81, %83, %cst_61 {dimension_numbers = #tpu.dot_dimension_numbers<[1], [0], [0], [1], [0, 0, 1, 1], [], []>} : vector<1x96xf32>, vector<96x120xf32>, vector<1x120xf32> -> vector<1x120xf32>
    %85 = arith.addf %80, %84 : vector<1x120xf32>
    %86 = vector.extract_strided_slice %59 {offsets = [5, 0], sizes = [1, 96], strides = [1, 1]} : vector<6x96xf32> to vector<1x96xf32>
    %c5 = arith.constant 5 : index
    %c0_62 = arith.constant 0 : index
    %c0_63 = arith.constant 0 : index
    %87 = vector.load %arg10[%c5, %c0_62, %c0_63] : memref<6x96x120xf32, #tpu.memory_space<vmem>>, vector<1x96x120xf32>
    %88 = vector.shape_cast %87 : vector<1x96x120xf32> to vector<96x120xf32>
    %cst_64 = arith.constant dense<0.000000e+00> : vector<1x120xf32>
    %89 = tpu.matmul %86, %88, %cst_64 {dimension_numbers = #tpu.dot_dimension_numbers<[1], [0], [0], [1], [0, 0, 1, 1], [], []>} : vector<1x96xf32>, vector<96x120xf32>, vector<1x120xf32> -> vector<1x120xf32>
    %90 = arith.addf %85, %89 : vector<1x120xf32>
    %cst_65 = arith.constant 0.000000e+00 : f32
    %91 = vector.broadcast %cst_65 : f32 to vector<1x120xf32>
    %92 = arith.maximumf %90, %91 : vector<1x120xf32>
    %c0_66 = arith.constant 0 : index
    %c0_67 = arith.constant 0 : index
    %93 = vector.load %arg12[%c0_66, %c0_67] : memref<120x84xf32, #tpu.memory_space<vmem>>, vector<120x84xf32>
    %cst_68 = arith.constant dense<0.000000e+00> : vector<1x84xf32>
    %94 = tpu.matmul %92, %93, %cst_68 {dimension_numbers = #tpu.dot_dimension_numbers<[1], [0], [0], [1], [0, 0, 1, 1], [], []>} : vector<1x120xf32>, vector<120x84xf32>, vector<1x84xf32> -> vector<1x84xf32>
    %c0_69 = arith.constant 0 : index
    %c0_70 = arith.constant 0 : index
    %95 = vector.load %arg13[%c0_69, %c0_70] : memref<1x84xf32, #tpu.memory_space<vmem>>, vector<1x84xf32>
    %96 = arith.addf %94, %95 : vector<1x84xf32>
    %cst_71 = arith.constant 0.000000e+00 : f32
    %97 = vector.broadcast %cst_71 : f32 to vector<1x84xf32>
    %98 = arith.maximumf %96, %97 : vector<1x84xf32>
    %c0_72 = arith.constant 0 : index
    %c0_73 = arith.constant 0 : index
    %99 = vector.load %arg14[%c0_72, %c0_73] : memref<84x10xf32, #tpu.memory_space<vmem>>, vector<84x10xf32>
    %cst_74 = arith.constant dense<0.000000e+00> : vector<1x10xf32>
    %100 = tpu.matmul %98, %99, %cst_74 {dimension_numbers = #tpu.dot_dimension_numbers<[1], [0], [0], [1], [0, 0, 1, 1], [], []>} : vector<1x84xf32>, vector<84x10xf32>, vector<1x10xf32> -> vector<1x10xf32>
    %c0_75 = arith.constant 0 : index
    %c0_76 = arith.constant 0 : index
    %101 = vector.load %arg15[%c0_75, %c0_76] : memref<1x10xf32, #tpu.memory_space<vmem>>, vector<1x10xf32>
    %102 = arith.addf %100, %101 : vector<1x10xf32>
    %c0_77 = arith.constant 0 : index
    %c0_78 = arith.constant 0 : index
    %c0_79 = arith.constant 0 : index
    %103 = vector.load %arg16[%c0_77, %c0_78, %c0_79] : memref<1x1x10xf32, #tpu.memory_space<vmem>>, vector<1x1x10xf32>
    %104 = vector.shape_cast %103 : vector<1x1x10xf32> to vector<1x10xf32>
    %105 = vector.shape_cast %102 : vector<1x10xf32> to vector<1x1x10xf32>
    tpu.vector_store %arg16[%c0_77, %c0_78, %c0_79], %105 {strides = array<i32>} : memref<1x1x10xf32, #tpu.memory_space<vmem>>, vector<1x1x10xf32>,
    return
  }
  func.func @transform_0(%arg0: i32) -> (i32, i32, i32, i32) {
    %c0_i32 = arith.constant 0 : i32
    %c0_i32_0 = arith.constant 0 : i32
    %c0_i32_1 = arith.constant 0 : i32
    %c0_i32_2 = arith.constant 0 : i32
    return %arg0, %c0_i32, %c0_i32_0, %c0_i32_1 : i32, i32, i32, i32
  }
  func.func @transform_1(%arg0: i32) -> (i32, i32, i32) {
    %c0_i32 = arith.constant 0 : i32
    %c0_i32_0 = arith.constant 0 : i32
    %c0_i32_1 = arith.constant 0 : i32
    %c0_i32_2 = arith.constant 0 : i32
    return %c0_i32, %c0_i32_0, %c0_i32_1 : i32, i32, i32
  }
  func.func @transform_2(%arg0: i32) -> (i32, i32) {
    %c0_i32 = arith.constant 0 : i32
    %c0_i32_0 = arith.constant 0 : i32
    %c0_i32_1 = arith.constant 0 : i32
    return %c0_i32, %c0_i32_0 : i32, i32
  }
  func.func @transform_3(%arg0: i32) -> (i32, i32) {
    %c0_i32 = arith.constant 0 : i32
    %c0_i32_0 = arith.constant 0 : i32
    %c0_i32_1 = arith.constant 0 : i32
    return %c0_i32, %c0_i32_0 : i32, i32
  }
  func.func @transform_4(%arg0: i32) -> (i32, i32) {
    %c0_i32 = arith.constant 0 : i32
    %c0_i32_0 = arith.constant 0 : i32
    %c0_i32_1 = arith.constant 0 : i32
    return %c0_i32, %c0_i32_0 : i32, i32
  }
  func.func @transform_5(%arg0: i32) -> (i32, i32, i32) {
    %c0_i32 = arith.constant 0 : i32
    %c0_i32_0 = arith.constant 0 : i32
    %c0_i32_1 = arith.constant 0 : i32
    %c0_i32_2 = arith.constant 0 : i32
    return %c0_i32, %c0_i32_0, %c0_i32_1 : i32, i32, i32
  }
  func.func @transform_6(%arg0: i32) -> (i32, i32) {
    %c0_i32 = arith.constant 0 : i32
    %c0_i32_0 = arith.constant 0 : i32
    %c0_i32_1 = arith.constant 0 : i32
    return %c0_i32, %c0_i32_0 : i32, i32
  }
  func.func @transform_7(%arg0: i32) -> (i32, i32) {
    %c0_i32 = arith.constant 0 : i32
    %c0_i32_0 = arith.constant 0 : i32
    %c0_i32_1 = arith.constant 0 : i32
    return %c0_i32, %c0_i32_0 : i32, i32
  }
  func.func @transform_8(%arg0: i32) -> (i32, i32) {
    %c0_i32 = arith.constant 0 : i32
    %c0_i32_0 = arith.constant 0 : i32
    %c0_i32_1 = arith.constant 0 : i32
    return %c0_i32, %c0_i32_0 : i32, i32
  }
  func.func @transform_9(%arg0: i32) -> (i32, i32, i32) {
    %c0_i32 = arith.constant 0 : i32
    %c0_i32_0 = arith.constant 0 : i32
    %c0_i32_1 = arith.constant 0 : i32
    %c0_i32_2 = arith.constant 0 : i32
    return %c0_i32, %c0_i32_0, %c0_i32_1 : i32, i32, i32
  }
  func.func @transform_10(%arg0: i32) -> (i32, i32) {
    %c0_i32 = arith.constant 0 : i32
    %c0_i32_0 = arith.constant 0 : i32
    %c0_i32_1 = arith.constant 0 : i32
    return %c0_i32, %c0_i32_0 : i32, i32
  }
  func.func @transform_11(%arg0: i32) -> (i32, i32) {
    %c0_i32 = arith.constant 0 : i32
    %c0_i32_0 = arith.constant 0 : i32
    %c0_i32_1 = arith.constant 0 : i32
    return %c0_i32, %c0_i32_0 : i32, i32
  }
  func.func @transform_12(%arg0: i32) -> (i32, i32) {
    %c0_i32 = arith.constant 0 : i32
    %c0_i32_0 = arith.constant 0 : i32
    %c0_i32_1 = arith.constant 0 : i32
    return %c0_i32, %c0_i32_0 : i32, i32
  }
  func.func @transform_13(%arg0: i32) -> (i32, i32) {
    %c0_i32 = arith.constant 0 : i32
    %c0_i32_0 = arith.constant 0 : i32
    %c0_i32_1 = arith.constant 0 : i32
    return %c0_i32, %c0_i32_0 : i32, i32
  }
  func.func @transform_14(%arg0: i32) -> (i32, i32) {
    %c0_i32 = arith.constant 0 : i32
    %c0_i32_0 = arith.constant 0 : i32
    %c0_i32_1 = arith.constant 0 : i32
    return %c0_i32, %c0_i32_0 : i32, i32
  }
  func.func @transform_15(%arg0: i32) -> (i32, i32, i32) {
    %c0_i32 = arith.constant 0 : i32
    %c0_i32_0 = arith.constant 0 : i32
    %c0_i32_1 = arith.constant 0 : i32
    return %arg0, %c0_i32, %c0_i32_0 : i32, i32, i32
  }
}

</mosaic_0001>

<llo_original>
// kernel: net_forward.1
$region0: #{net_forward.1}
  #allocation0 [shape = 'u32[]', space=smem, size = 0x4, offset = 0x4, fixed_abs, tag = 'smem constant byte address 0x4 - core index']
  #allocation1 [shape = 'u32[72,128]{1,0:T(1,128)}', space=vmem, size = 0x9000, scoped, tag = 'internal scratch']
  %s0 = inlined_call_operand.vmem [shape: f32[2,1,32,32], index: 0, kind: input, shape index: {}]
  %s1 = inlined_call_operand.vmem [shape: f32[3,32,180], index: 1, kind: input, shape index: {}]
  %s2 = inlined_call_operand.vmem [shape: f32[1,180], index: 2, kind: input, shape index: {}]
  %s3 = inlined_call_operand.hbm [shape: f32[15,29], index: 3, kind: input, shape index: {}]
  %s4 = inlined_call_operand.vmem [shape: f32[179,90], index: 4, kind: input, shape index: {}]
  %s5 = inlined_call_operand.hbm [shape: f32[3,90,208], index: 5, kind: input, shape index: {}]
  %s6 = inlined_call_operand.vmem [shape: f32[1,208], index: 6, kind: input, shape index: {}]
  %s7 = inlined_call_operand.hbm [shape: f32[6,12], index: 7, kind: input, shape index: {}]
  %s8 = inlined_call_operand.vmem [shape: f32[207,96], index: 8, kind: input, shape index: {}]
  %s9 = inlined_call_operand.hbm [shape: f32[6,96,120], index: 9, kind: input, shape index: {}]
  %s10 = inlined_call_operand.hbm [shape: f32[1,120], index: 10, kind: input, shape index: {}]
  %s11 = inlined_call_operand.vmem [shape: f32[120,84], index: 11, kind: input, shape index: {}]
  %s12 = inlined_call_operand.hbm [shape: f32[1,84], index: 12, kind: input, shape index: {}]
  %s13 = inlined_call_operand.vmem [shape: f32[84,10], index: 13, kind: input, shape index: {}]
  %s14 = inlined_call_operand.hbm [shape: f32[1,10], index: 14, kind: input, shape index: {}]
  %s15 = inlined_call_operand.hbm [shape: f32[2,1,10], index: 15, kind: output, shape index: {}]
  %s16 = sld [smem:[#allocation0]]
  $region121: #{net_forward.1} parent=0
    _
  %s18 = ssub.s32 1, %s16
  %s19 = scalar_select 0, %s18, %s16
  $region1: #{net_forward.1} parent=0
    #allocation2 [shape = 'u8[8192]{0}', space=vmem, size = 0x2000, scoped, tag = 'input window, operand 3, single buffered']
    #allocation3 [shape = 's32[2]{0}', space=sflag, size = 0x8, scoped, tag = 'scoped memory for net_forward.1']
    #allocation4 [shape = 's32[2]{0}', space=sflag, size = 0x8, scoped, tag = 'scoped memory for net_forward.1']
    #allocation5 [shape = 'u8[294912]{0}', space=vmem, size = 0x48000, scoped, tag = 'input window, operand 5, single buffered']
    #allocation6 [shape = 's32[1]{0}', space=sflag, size = 0x4, scoped, tag = 'scoped memory for net_forward.1']
    #allocation7 [shape = 'u8[4096]{0}', space=vmem, size = 0x1000, scoped, tag = 'input window, operand 7, single buffered']
    #allocation8 [shape = 'u8[294912]{0}', space=vmem, size = 0x48000, scoped, tag = 'input window, operand 9, single buffered']
    #allocation9 [shape = 's32[1]{0}', space=sflag, size = 0x4, scoped, tag = 'scoped memory for net_forward.1']
    #allocation10 [shape = 'u8[512]{0}', space=vmem, size = 0x400, scoped, tag = 'input window, operand 10, single buffered']
    #allocation11 [shape = 'u8[512]{0}', space=vmem, size = 0x400, scoped, tag = 'input window, operand 12, single buffered']
    #allocation12 [shape = 's32[1]{0}', space=sflag, size = 0x4, scoped, tag = 'scoped memory for net_forward.1']
    #allocation13 [shape = 'u8[512]{0}', space=vmem, size = 0x400, scoped, tag = 'input window, operand 14, single buffered']
    #allocation14 [shape = 'u8[1024]{0}', space=vmem, size = 0x400, scoped, tag = 'output window, operand 0']
    %20 = vsyncpa [#allocation3], 0
    %21 = vsyncpa [#allocation6], 0
    %22 = vsyncpa [#allocation9], 0
    %23 = vsyncpa [#allocation12], 0
    %24 = vsyncpa [#allocation4], 0
    %s25 = scalar_lea.sflag [#allocation4], 1
    %26 = vsyncpa %s25, 0
    loop: start=0, step=1, limit=4
    $region2: #{net_forward.1} parent=1 // loop_pre_header
      _
    $region3: #{net_forward.1} parent=1 // loop_header
      %s28 = sphi 0, %s32
      %p29 = scmp.ge.s32.totalorder %s28, 4
      %s38 = sphi 0, %s40
      %s41 = sphi 0, %s38
      %s42 = sphi 0, %s41
      %s58 = sphi 0, %s42
      %s62 = sphi 0, %s62
      %s64 = sphi 0, %s62
      %s65 = sphi 0, %s64
      %s79 = sphi 0, %s65
      %s83 = sphi 0, %s83
      %s85 = sphi 0, %s83
      %s86 = sphi 0, %s85
      %s100 = sphi 0, %s86
      %s104 = sphi 0, %s104
      %s106 = sphi 0, %s104
      %s107 = sphi 0, %s106
      %s121 = sphi 0, %s107
      %s125 = sphi 0, %s125
      %s127 = sphi 0, %s125
      %s128 = sphi 0, %s127
      %s142 = sphi 0, %s128
      %s146 = sphi 0, %s146
      %s148 = sphi 0, %s146
      %s149 = sphi 0, %s148
      %s163 = sphi 0, %s149
      %s167 = sphi 0, %s167
      %s169 = sphi 0, %s167
      %s170 = sphi 0, %s169
      %s184 = sphi 0, %s170
      %s188 = sphi 0, %s188
      %s190 = sphi 0, %s188
      %s191 = sphi 0, %s190
      %s205 = sphi 0, %s191
      %s209 = sphi 0, %s209
      %s211 = sphi 0, %s209
      %s212 = sphi 0, %s211
      %s226 = sphi 0, %s212
      %s230 = sphi 0, %s230
      %s232 = sphi 0, %s230
      %s233 = sphi 0, %s232
      %s247 = sphi 0, %s233
      %s251 = sphi 0, %s251
      %s253 = sphi 0, %s251
      %s254 = sphi 0, %s253
      %s268 = sphi 0, %s254
      %s272 = sphi 0, %s272
      %s274 = sphi 0, %s272
      %s275 = sphi 0, %s274
      %s289 = sphi 0, %s275
      %s293 = sphi 0, %s293
      %s295 = sphi 0, %s293
      %s296 = sphi 0, %s295
      %s310 = sphi 0, %s296
      %s314 = sphi 0, %s314
      %s316 = sphi 0, %s314
      %s317 = sphi 0, %s316
      %s331 = sphi 0, %s317
      %s335 = sphi 0, %s335
      %s337 = sphi 0, %s335
      %s338 = sphi 0, %s337
      %s352 = sphi 0, %s338
      %s358 = sphi 0, %s360
      %s361 = sphi 0, %s358
      %s362 = sphi 0, %s361
      %s378 = sphi 0, %s362
    $region4: #{net_forward.1} parent=1 // loop_header_branch
      %31 = sbr.rel (%p29) target = $region8
    $region5: #{net_forward.1} parent=1 // loop_body
      %s33 = ssub.s32 %s28, 1
      %s34 = ssub.s32 %s28, 2
      %s35 = sadd.s32 %s28, 1
      %s36 = ssub.s32 %s28, %s35
      %p37 = scmp.eq.s32.totalorder %s36, 0
      %s39 = sadd.s32 %s38, 1
      %s40 = scalar_select %p37, %s38, %s39
      %p43 = pneg %p37
      %p44 = scmp.eq.s32.totalorder %s28, 1
      %p45 = por %p43, %p44
      %p46 = scmp.ne.s32.totalorder %s38, %s41
      %p47 = scmp.eq.s32.totalorder %s28, 0
      %p48 = por %p46, %p47
      %p49 = scmp.ne.s32.totalorder %s38, %s41
      %p50 = scmp.eq.s32.totalorder %s33, 1
      %p51 = por %p49, %p50
      %p52 = scmp.ne.s32.totalorder %s41, %s42
      %p53 = scmp.eq.s32.totalorder %s33, 0
      %p54 = por %p52, %p53
      %p55 = scmp.ne.s32.totalorder %s41, %s42
      %p56 = scmp.eq.s32.totalorder %s34, 1
      %p57 = por %p55, %p56
      %p59 = scmp.ne.s32.totalorder %s42, %s58
      %p60 = scmp.eq.s32.totalorder %s34, 0
      %p61 = por %p59, %p60
      %s63 = sadd.s32 %s62, 1
      %p66 = scmp.eq.s32.totalorder %s28, 1
      %p67 = scmp.ne.s32.totalorder %s62, %s64
      %p68 = scmp.eq.s32.totalorder %s28, 0
      %p69 = por %p67, %p68
      %p70 = scmp.ne.s32.totalorder %s62, %s64
      %p71 = scmp.eq.s32.totalorder %s33, 1
      %p72 = por %p70, %p71
      %p73 = scmp.ne.s32.totalorder %s64, %s65
      %p74 = scmp.eq.s32.totalorder %s33, 0
      %p75 = por %p73, %p74
      %p76 = scmp.ne.s32.totalorder %s64, %s65
      %p77 = scmp.eq.s32.totalorder %s34, 1
      %p78 = por %p76, %p77
      %p80 = scmp.ne.s32.totalorder %s65, %s79
      %p81 = scmp.eq.s32.totalorder %s34, 0
      %p82 = por %p80, %p81
      %s84 = sadd.s32 %s83, 1
      %p87 = scmp.eq.s32.totalorder %s28, 1
      %p88 = scmp.ne.s32.totalorder %s83, %s85
      %p89 = scmp.eq.s32.totalorder %s28, 0
      %p90 = por %p88, %p89
      %p91 = scmp.ne.s32.totalorder %s83, %s85
      %p92 = scmp.eq.s32.totalorder %s33, 1
      %p93 = por %p91, %p92
      %p94 = scmp.ne.s32.totalorder %s85, %s86
      %p95 = scmp.eq.s32.totalorder %s33, 0
      %p96 = por %p94, %p95
      %p97 = scmp.ne.s32.totalorder %s85, %s86
      %p98 = scmp.eq.s32.totalorder %s34, 1
      %p99 = por %p97, %p98
      %p101 = scmp.ne.s32.totalorder %s86, %s100
      %p102 = scmp.eq.s32.totalorder %s34, 0
      %p103 = por %p101, %p102
      %s105 = sadd.s32 %s104, 1
      %p108 = scmp.eq.s32.totalorder %s28, 1
      %p109 = scmp.ne.s32.totalorder %s104, %s106
      %p110 = scmp.eq.s32.totalorder %s28, 0
      %p111 = por %p109, %p110
      %p112 = scmp.ne.s32.totalorder %s104, %s106
      %p113 = scmp.eq.s32.totalorder %s33, 1
      %p114 = por %p112, %p113
      %p115 = scmp.ne.s32.totalorder %s106, %s107
      %p116 = scmp.eq.s32.totalorder %s33, 0
      %p117 = por %p115, %p116
      %p118 = scmp.ne.s32.totalorder %s106, %s107
      %p119 = scmp.eq.s32.totalorder %s34, 1
      %p120 = por %p118, %p119
      %p122 = scmp.ne.s32.totalorder %s107, %s121
      %p123 = scmp.eq.s32.totalorder %s34, 0
      %p124 = por %p122, %p123
      %s126 = sadd.s32 %s125, 1
      %p129 = scmp.eq.s32.totalorder %s28, 1
      %p130 = scmp.ne.s32.totalorder %s125, %s127
      %p131 = scmp.eq.s32.totalorder %s28, 0
      %p132 = por %p130, %p131
      %p133 = scmp.ne.s32.totalorder %s125, %s127
      %p134 = scmp.eq.s32.totalorder %s33, 1
      %p135 = por %p133, %p134
      %p136 = scmp.ne.s32.totalorder %s127, %s128
      %p137 = scmp.eq.s32.totalorder %s33, 0
      %p138 = por %p136, %p137
      %p139 = scmp.ne.s32.totalorder %s127, %s128
      %p140 = scmp.eq.s32.totalorder %s34, 1
      %p141 = por %p139, %p140
      %p143 = scmp.ne.s32.totalorder %s128, %s142
      %p144 = scmp.eq.s32.totalorder %s34, 0
      %p145 = por %p143, %p144
      %s147 = sadd.s32 %s146, 1
      %p150 = scmp.eq.s32.totalorder %s28, 1
      %p151 = scmp.ne.s32.totalorder %s146, %s148
      %p152 = scmp.eq.s32.totalorder %s28, 0
      %p153 = por %p151, %p152
      %p154 = scmp.ne.s32.totalorder %s146, %s148
      %p155 = scmp.eq.s32.totalorder %s33, 1
      %p156 = por %p154, %p155
      %p157 = scmp.ne.s32.totalorder %s148, %s149
      %p158 = scmp.eq.s32.totalorder %s33, 0
      %p159 = por %p157, %p158
      %p160 = scmp.ne.s32.totalorder %s148, %s149
      %p161 = scmp.eq.s32.totalorder %s34, 1
      %p162 = por %p160, %p161
      %p164 = scmp.ne.s32.totalorder %s149, %s163
      %p165 = scmp.eq.s32.totalorder %s34, 0
      %p166 = por %p164, %p165
      %s168 = sadd.s32 %s167, 1
      %p171 = scmp.eq.s32.totalorder %s28, 1
      %p172 = scmp.ne.s32.totalorder %s167, %s169
      %p173 = scmp.eq.s32.totalorder %s28, 0
      %p174 = por %p172, %p173
      %p175 = scmp.ne.s32.totalorder %s167, %s169
      %p176 = scmp.eq.s32.totalorder %s33, 1
      %p177 = por %p175, %p176
      %p178 = scmp.ne.s32.totalorder %s169, %s170
      %p179 = scmp.eq.s32.totalorder %s33, 0
      %p180 = por %p178, %p179
      %p181 = scmp.ne.s32.totalorder %s169, %s170
      %p182 = scmp.eq.s32.totalorder %s34, 1
      %p183 = por %p181, %p182
      %p185 = scmp.ne.s32.totalorder %s170, %s184
      %p186 = scmp.eq.s32.totalorder %s34, 0
      %p187 = por %p185, %p186
      %s189 = sadd.s32 %s188, 1
      %p192 = scmp.eq.s32.totalorder %s28, 1
      %p193 = scmp.ne.s32.totalorder %s188, %s190
      %p194 = scmp.eq.s32.totalorder %s28, 0
      %p195 = por %p193, %p194
      %p196 = scmp.ne.s32.totalorder %s188, %s190
      %p197 = scmp.eq.s32.totalorder %s33, 1
      %p198 = por %p196, %p197
      %p199 = scmp.ne.s32.totalorder %s190, %s191
      %p200 = scmp.eq.s32.totalorder %s33, 0
      %p201 = por %p199, %p200
      %p202 = scmp.ne.s32.totalorder %s190, %s191
      %p203 = scmp.eq.s32.totalorder %s34, 1
      %p204 = por %p202, %p203
      %p206 = scmp.ne.s32.totalorder %s191, %s205
      %p207 = scmp.eq.s32.totalorder %s34, 0
      %p208 = por %p206, %p207
      %s210 = sadd.s32 %s209, 1
      %p213 = scmp.eq.s32.totalorder %s28, 1
      %p214 = scmp.ne.s32.totalorder %s209, %s211
      %p215 = scmp.eq.s32.totalorder %s28, 0
      %p216 = por %p214, %p215
      %p217 = scmp.ne.s32.totalorder %s209, %s211
      %p218 = scmp.eq.s32.totalorder %s33, 1
      %p219 = por %p217, %p218
      %p220 = scmp.ne.s32.totalorder %s211, %s212
      %p221 = scmp.eq.s32.totalorder %s33, 0
      %p222 = por %p220, %p221
      %p223 = scmp.ne.s32.totalorder %s211, %s212
      %p224 = scmp.eq.s32.totalorder %s34, 1
      %p225 = por %p223, %p224
      %p227 = scmp.ne.s32.totalorder %s212, %s226
      %p228 = scmp.eq.s32.totalorder %s34, 0
      %p229 = por %p227, %p228
      %s231 = sadd.s32 %s230, 1
      %p234 = scmp.eq.s32.totalorder %s28, 1
      %p235 = scmp.ne.s32.totalorder %s230, %s232
      %p236 = scmp.eq.s32.totalorder %s28, 0
      %p237 = por %p235, %p236
      %p238 = scmp.ne.s32.totalorder %s230, %s232
      %p239 = scmp.eq.s32.totalorder %s33, 1
      %p240 = por %p238, %p239
      %p241 = scmp.ne.s32.totalorder %s232, %s233
      %p242 = scmp.eq.s32.totalorder %s33, 0
      %p243 = por %p241, %p242
      %p244 = scmp.ne.s32.totalorder %s232, %s233
      %p245 = scmp.eq.s32.totalorder %s34, 1
      %p246 = por %p244, %p245
      %p248 = scmp.ne.s32.totalorder %s233, %s247
      %p249 = scmp.eq.s32.totalorder %s34, 0
      %p250 = por %p248, %p249
      %s252 = sadd.s32 %s251, 1
      %p255 = scmp.eq.s32.totalorder %s28, 1
      %p256 = scmp.ne.s32.totalorder %s251, %s253
      %p257 = scmp.eq.s32.totalorder %s28, 0
      %p258 = por %p256, %p257
      %p259 = scmp.ne.s32.totalorder %s251, %s253
      %p260 = scmp.eq.s32.totalorder %s33, 1
      %p261 = por %p259, %p260
      %p262 = scmp.ne.s32.totalorder %s253, %s254
      %p263 = scmp.eq.s32.totalorder %s33, 0
      %p264 = por %p262, %p263
      %p265 = scmp.ne.s32.totalorder %s253, %s254
      %p266 = scmp.eq.s32.totalorder %s34, 1
      %p267 = por %p265, %p266
      %p269 = scmp.ne.s32.totalorder %s254, %s268
      %p270 = scmp.eq.s32.totalorder %s34, 0
      %p271 = por %p269, %p270
      %s273 = sadd.s32 %s272, 1
      %p276 = scmp.eq.s32.totalorder %s28, 1
      %p277 = scmp.ne.s32.totalorder %s272, %s274
      %p278 = scmp.eq.s32.totalorder %s28, 0
      %p279 = por %p277, %p278
      %p280 = scmp.ne.s32.totalorder %s272, %s274
      %p281 = scmp.eq.s32.totalorder %s33, 1
      %p282 = por %p280, %p281
      %p283 = scmp.ne.s32.totalorder %s274, %s275
      %p284 = scmp.eq.s32.totalorder %s33, 0
      %p285 = por %p283, %p284
      %p286 = scmp.ne.s32.totalorder %s274, %s275
      %p287 = scmp.eq.s32.totalorder %s34, 1
      %p288 = por %p286, %p287
      %p290 = scmp.ne.s32.totalorder %s275, %s289
      %p291 = scmp.eq.s32.totalorder %s34, 0
      %p292 = por %p290, %p291
      %s294 = sadd.s32 %s293, 1
      %p297 = scmp.eq.s32.totalorder %s28, 1
      %p298 = scmp.ne.s32.totalorder %s293, %s295
      %p299 = scmp.eq.s32.totalorder %s28, 0
      %p300 = por %p298, %p299
      %p301 = scmp.ne.s32.totalorder %s293, %s295
      %p302 = scmp.eq.s32.totalorder %s33, 1
      %p303 = por %p301, %p302
      %p304 = scmp.ne.s32.totalorder %s295, %s296
      %p305 = scmp.eq.s32.totalorder %s33, 0
      %p306 = por %p304, %p305
      %p307 = scmp.ne.s32.totalorder %s295, %s296
      %p308 = scmp.eq.s32.totalorder %s34, 1
      %p309 = por %p307, %p308
      %p311 = scmp.ne.s32.totalorder %s296, %s310
      %p312 = scmp.eq.s32.totalorder %s34, 0
      %p313 = por %p311, %p312
      %s315 = sadd.s32 %s314, 1
      %p318 = scmp.eq.s32.totalorder %s28, 1
      %p319 = scmp.ne.s32.totalorder %s314, %s316
      %p320 = scmp.eq.s32.totalorder %s28, 0
      %p321 = por %p319, %p320
      %p322 = scmp.ne.s32.totalorder %s314, %s316
      %p323 = scmp.eq.s32.totalorder %s33, 1
      %p324 = por %p322, %p323
      %p325 = scmp.ne.s32.totalorder %s316, %s317
      %p326 = scmp.eq.s32.totalorder %s33, 0
      %p327 = por %p325, %p326
      %p328 = scmp.ne.s32.totalorder %s316, %s317
      %p329 = scmp.eq.s32.totalorder %s34, 1
      %p330 = por %p328, %p329
      %p332 = scmp.ne.s32.totalorder %s317, %s331
      %p333 = scmp.eq.s32.totalorder %s34, 0
      %p334 = por %p332, %p333
      %s336 = sadd.s32 %s335, 1
      %p339 = scmp.eq.s32.totalorder %s28, 1
      %p340 = scmp.ne.s32.totalorder %s335, %s337
      %p341 = scmp.eq.s32.totalorder %s28, 0
      %p342 = por %p340, %p341
      %p343 = scmp.ne.s32.totalorder %s335, %s337
      %p344 = scmp.eq.s32.totalorder %s33, 1
      %p345 = por %p343, %p344
      %p346 = scmp.ne.s32.totalorder %s337, %s338
      %p347 = scmp.eq.s32.totalorder %s33, 0
      %p348 = por %p346, %p347
      %p349 = scmp.ne.s32.totalorder %s337, %s338
      %p350 = scmp.eq.s32.totalorder %s34, 1
      %p351 = por %p349, %p350
      %p353 = scmp.ne.s32.totalorder %s338, %s352
      %p354 = scmp.eq.s32.totalorder %s34, 0
      %p355 = por %p353, %p354
      %s356 = ssub.s32 %s28, %s35
      %p357 = scmp.eq.s32.totalorder %s356, 0
      %s359 = sadd.s32 %s358, 1
      %s360 = scalar_select %p357, %s358, %s359
      %p363 = pneg %p357
      %p364 = scmp.eq.s32.totalorder %s28, 1
      %p365 = por %p363, %p364
      %p366 = scmp.ne.s32.totalorder %s358, %s361
      %p367 = scmp.eq.s32.totalorder %s28, 0
      %p368 = por %p366, %p367
      %p369 = scmp.ne.s32.totalorder %s358, %s361
      %p370 = scmp.eq.s32.totalorder %s33, 1
      %p371 = por %p369, %p370
      %p372 = scmp.ne.s32.totalorder %s361, %s362
      %p373 = scmp.eq.s32.totalorder %s33, 0
      %p374 = por %p372, %p373
      %p375 = scmp.ne.s32.totalorder %s361, %s362
      %p376 = scmp.eq.s32.totalorder %s34, 1
      %p377 = por %p375, %p376
      %p379 = scmp.ne.s32.totalorder %s362, %s378
      %p380 = scmp.eq.s32.totalorder %s34, 0
      %p381 = por %p379, %p380
      %p382 = scmp.le.s32.totalorder 1, %s28
      %p383 = scmp.lt.s32.totalorder %s28, 3
      %p384 = pnand %p382, %p383
      %p385 = pneg %p384
      // Predicated region
      $region9: #{net_forward.1} parent=5 // pred_check
        _
      $region10: #{net_forward.1} parent=5 // pred_check_branch
        %387 = sbr.rel (%p384) target = $region12
      $region11: #{net_forward.1} parent=5 // pred_region
        %s388 = ssub.s32 %s28, 1
        // Predicated region
        $region13: #{net_forward.1} parent=11 // pred_check
          %p389 = pneg %p75
        $region14: #{net_forward.1} parent=11 // pred_check_branch
          %391 = sbr.rel (%p389) target = $region16
        $region15: #{net_forward.1} parent=11 // pred_region
          _
        $region16: #{net_forward.1} parent=11 // pred_fallthru
          _
        // Predicated region
        $region17: #{net_forward.1} parent=11 // pred_check
          %p392 = pneg %p96
        $region18: #{net_forward.1} parent=11 // pred_check_branch
          %394 = sbr.rel (%p392) target = $region20
        $region19: #{net_forward.1} parent=11 // pred_region
          _
        $region20: #{net_forward.1} parent=11 // pred_fallthru
          _
        // Predicated region
        $region21: #{net_forward.1} parent=11 // pred_check
          %p395 = pneg %p117
        $region22: #{net_forward.1} parent=11 // pred_check_branch
          %397 = sbr.rel (%p395) target = $region24
        $region23: #{net_forward.1} parent=11 // pred_region
          %399 = vsyncadd [#allocation3], 0
          %s400 = sshll.u32 %s3, 4
          %s401 = int_to_ptr.hbm [resolvable:$true] %s400
          %s402 = sshll.u32 [#allocation2], 4
          %s403 = int_to_ptr.vmem [resolvable:$true] %s402
          %408 = dma.hbm_to_vmem [thread:$0]  %s401, 256, %s403, [#allocation3], 128, 128, 8
        $region24: #{net_forward.1} parent=11 // pred_fallthru
          _
        // Predicated region
        $region25: #{net_forward.1} parent=11 // pred_check
          %p409 = pneg %p138
        $region26: #{net_forward.1} parent=11 // pred_check_branch
          %411 = sbr.rel (%p409) target = $region28
        $region27: #{net_forward.1} parent=11 // pred_region
          _
        $region28: #{net_forward.1} parent=11 // pred_fallthru
          _
        // Predicated region
        $region29: #{net_forward.1} parent=11 // pred_check
          %p412 = pneg %p159
        $region30: #{net_forward.1} parent=11 // pred_check_branch
          %414 = sbr.rel (%p412) target = $region32
        $region31: #{net_forward.1} parent=11 // pred_region
          %416 = vsyncadd [#allocation6], 0
          %s417 = sshll.u32 %s5, 4
          %s418 = int_to_ptr.hbm [resolvable:$true] %s417
          %s419 = sshll.u32 [#allocation5], 4
          %s420 = int_to_ptr.vmem [resolvable:$true] %s419
          %425 = dma.hbm_to_vmem [thread:$0]  %s418, 9216, %s420, [#allocation6], 256, 256, 16
        $region32: #{net_forward.1} parent=11 // pred_fallthru
          _
        // Predicated region
        $region33: #{net_forward.1} parent=11 // pred_check
          %p426 = pneg %p180
        $region34: #{net_forward.1} parent=11 // pred_check_branch
          %428 = sbr.rel (%p426) target = $region36
        $region35: #{net_forward.1} parent=11 // pred_region
          _
        $region36: #{net_forward.1} parent=11 // pred_fallthru
          _
        // Predicated region
        $region37: #{net_forward.1} parent=11 // pred_check
          %p429 = pneg %p201
        $region38: #{net_forward.1} parent=11 // pred_check_branch
          %431 = sbr.rel (%p429) target = $region40
        $region39: #{net_forward.1} parent=11 // pred_region
          %433 = vsyncadd [#allocation6], 0
          %s435 = sshll.u32 %s7, 4
          %s436 = int_to_ptr.hbm [resolvable:$true] %s435
          %s437 = sshll.u32 [#allocation7], 4
          %s438 = int_to_ptr.vmem [resolvable:$true] %s437
          %440 = dma.hbm_to_vmem [thread:$0]  %s436, 128, %s438, [#allocation6]
        $region40: #{net_forward.1} parent=11 // pred_fallthru
          _
        // Predicated region
        $region41: #{net_forward.1} parent=11 // pred_check
          %p441 = pneg %p222
        $region42: #{net_forward.1} parent=11 // pred_check_branch
          %443 = sbr.rel (%p441) target = $region44
        $region43: #{net_forward.1} parent=11 // pred_region
          _
        $region44: #{net_forward.1} parent=11 // pred_fallthru
          _
        // Predicated region
        $region45: #{net_forward.1} parent=11 // pred_check
          %p444 = pneg %p243
        $region46: #{net_forward.1} parent=11 // pred_check_branch
          %446 = sbr.rel (%p444) target = $region48
        $region47: #{net_forward.1} parent=11 // pred_region
          %448 = vsyncadd [#allocation9], 0
          %s449 = sshll.u32 %s9, 4
          %s450 = int_to_ptr.hbm [resolvable:$true] %s449
          %s451 = sshll.u32 [#allocation8], 4
          %s452 = int_to_ptr.vmem [resolvable:$true] %s451
          %457 = dma.hbm_to_vmem [thread:$0]  %s450, 9216, %s452, [#allocation9], 128, 128, 8
        $region48: #{net_forward.1} parent=11 // pred_fallthru
          _
        // Predicated region
        $region49: #{net_forward.1} parent=11 // pred_check
          %p458 = pneg %p264
        $region50: #{net_forward.1} parent=11 // pred_check_branch
          %460 = sbr.rel (%p458) target = $region52
        $region51: #{net_forward.1} parent=11 // pred_region
          %462 = vsyncadd [#allocation9], 0
          %s464 = sshll.u32 %s10, 4
          %s465 = int_to_ptr.hbm [resolvable:$true] %s464
          %s466 = sshll.u32 [#allocation10], 4
          %s467 = int_to_ptr.vmem [resolvable:$true] %s466
          %469 = dma.hbm_to_vmem [thread:$0]  %s465, 16, %s467, [#allocation9]
        $region52: #{net_forward.1} parent=11 // pred_fallthru
          _
        // Predicated region
        $region53: #{net_forward.1} parent=11 // pred_check
          %p470 = pneg %p285
        $region54: #{net_forward.1} parent=11 // pred_check_branch
          %472 = sbr.rel (%p470) target = $region56
        $region55: #{net_forward.1} parent=11 // pred_region
          _
        $region56: #{net_forward.1} parent=11 // pred_fallthru
          _
        // Predicated region
        $region57: #{net_forward.1} parent=11 // pred_check
          %p473 = pneg %p306
        $region58: #{net_forward.1} parent=11 // pred_check_branch
          %475 = sbr.rel (%p473) target = $region60
        $region59: #{net_forward.1} parent=11 // pred_region
          %477 = vsyncadd [#allocation12], 0
          %s479 = sshll.u32 %s12, 4
          %s480 = int_to_ptr.hbm [resolvable:$true] %s479
          %s481 = sshll.u32 [#allocation11], 4
          %s482 = int_to_ptr.vmem [resolvable:$true] %s481
          %484 = dma.hbm_to_vmem [thread:$0]  %s480, 16, %s482, [#allocation12]
        $region60: #{net_forward.1} parent=11 // pred_fallthru
          _
        // Predicated region
        $region61: #{net_forward.1} parent=11 // pred_check
          %p485 = pneg %p327
        $region62: #{net_forward.1} parent=11 // pred_check_branch
          %487 = sbr.rel (%p485) target = $region64
        $region63: #{net_forward.1} parent=11 // pred_region
          _
        $region64: #{net_forward.1} parent=11 // pred_fallthru
          _
        // Predicated region
        $region65: #{net_forward.1} parent=11 // pred_check
          %p488 = pneg %p348
        $region66: #{net_forward.1} parent=11 // pred_check_branch
          %490 = sbr.rel (%p488) target = $region68
        $region67: #{net_forward.1} parent=11 // pred_region
          %492 = vsyncadd [#allocation12], 0
          %s494 = sshll.u32 %s14, 4
          %s495 = int_to_ptr.hbm [resolvable:$true] %s494
          %s496 = sshll.u32 [#allocation13], 4
          %s497 = int_to_ptr.vmem [resolvable:$true] %s496
          %499 = dma.hbm_to_vmem [thread:$0]  %s495, 16, %s497, [#allocation12]
        $region68: #{net_forward.1} parent=11 // pred_fallthru
          _
      $region12: #{net_forward.1} parent=5 // pred_fallthru
        _
      %p500 = scmp.lt.s32.totalorder %s28, 2
      // Predicated region
      $region69: #{net_forward.1} parent=5 // pred_check
        %p501 = pneg %p500
      $region70: #{net_forward.1} parent=5 // pred_check_branch
        %503 = sbr.rel (%p501) target = $region72
      $region71: #{net_forward.1} parent=5 // pred_region
        // Predicated region
        $region73: #{net_forward.1} parent=71 // pred_check
          %p504 = pneg %p48
        $region74: #{net_forward.1} parent=71 // pred_check_branch
          %506 = sbr.rel (%p504) target = $region76
        $region75: #{net_forward.1} parent=71 // pred_region
          %p507 = scmp.lt.s32.totalorder %s28, 1
          %s508 = scalar_select %p507, %s28, 1
          %s509 = smul.addr %s508, 4
          %s510 = smul.addr %s509, 8
          %s511 = scalar_lea.vmem %s0, %s510
        $region76: #{net_forward.1} parent=71 // pred_fallthru
          _
      $region72: #{net_forward.1} parent=5 // pred_fallthru
        _
      %p512 = scmp.le.s32.totalorder 1, %s28
      %p513 = scmp.lt.s32.totalorder %s28, 3
      %p514 = pnand %p512, %p513
      %p515 = pneg %p514
      // Predicated region
      $region77: #{net_forward.1} parent=5 // pred_check
        _
      $region78: #{net_forward.1} parent=5 // pred_check_branch
        %517 = sbr.rel (%p514) target = $region80
      $region79: #{net_forward.1} parent=5 // pred_region
        %s518 = ssub.s32 %s28, 1
        // Predicated region
        $region81: #{net_forward.1} parent=79 // pred_check
          %p519 = pneg %p117
        $region82: #{net_forward.1} parent=79 // pred_check_branch
          %521 = sbr.rel (%p519) target = $region84
        $region83: #{net_forward.1} parent=79 // pred_region
          %523 = dma.done [#allocation3], 256
        $region84: #{net_forward.1} parent=79 // pred_fallthru
          _
        // Predicated region
        $region85: #{net_forward.1} parent=79 // pred_check
          %p524 = pneg %p159
        $region86: #{net_forward.1} parent=79 // pred_check_branch
          %526 = sbr.rel (%p524) target = $region88
        $region87: #{net_forward.1} parent=79 // pred_region
          %528 = dma.done [#allocation6], 9216
        $region88: #{net_forward.1} parent=79 // pred_fallthru
          _
        // Predicated region
        $region89: #{net_forward.1} parent=79 // pred_check
          %p529 = pneg %p201
        $region90: #{net_forward.1} parent=79 // pred_check_branch
          %531 = sbr.rel (%p529) target = $region92
        $region91: #{net_forward.1} parent=79 // pred_region
          %533 = dma.done [#allocation6], 128
        $region92: #{net_forward.1} parent=79 // pred_fallthru
          _
        // Predicated region
        $region93: #{net_forward.1} parent=79 // pred_check
          %p534 = pneg %p243
        $region94: #{net_forward.1} parent=79 // pred_check_branch
          %536 = sbr.rel (%p534) target = $region96
        $region95: #{net_forward.1} parent=79 // pred_region
          %538 = dma.done [#allocation9], 9216
        $region96: #{net_forward.1} parent=79 // pred_fallthru
          _
        // Predicated region
        $region97: #{net_forward.1} parent=79 // pred_check
          %p539 = pneg %p264
        $region98: #{net_forward.1} parent=79 // pred_check_branch
          %541 = sbr.rel (%p539) target = $region100
        $region99: #{net_forward.1} parent=79 // pred_region
          %543 = dma.done [#allocation9], 16
        $region100: #{net_forward.1} parent=79 // pred_fallthru
          _
        // Predicated region
        $region101: #{net_forward.1} parent=79 // pred_check
          %p544 = pneg %p306
        $region102: #{net_forward.1} parent=79 // pred_check_branch
          %546 = sbr.rel (%p544) target = $region104
        $region103: #{net_forward.1} parent=79 // pred_region
          %548 = dma.done [#allocation12], 16
        $region104: #{net_forward.1} parent=79 // pred_fallthru
          _
        // Predicated region
        $region105: #{net_forward.1} parent=79 // pred_check
          %p549 = pneg %p348
        $region106: #{net_forward.1} parent=79 // pred_check_branch
          %551 = sbr.rel (%p549) target = $region108
        $region107: #{net_forward.1} parent=79 // pred_region
          %553 = dma.done [#allocation12], 16
        $region108: #{net_forward.1} parent=79 // pred_fallthru
          _
        %p554 = scmp.lt.s32.totalorder %s33, 1
        %s555 = scalar_select %p554, %s33, 1
        %s556 = smul.addr %s555, 4
        %s557 = smul.addr %s556, 8
        %s558 = scalar_lea.vmem %s0, %s557
        %p559 = pneg %p54
        %p560 = pneg %p51
        %p561 = pneg %p75
        %p562 = pneg %p72
        %p563 = pneg %p96
        %p564 = pneg %p93
        %p565 = pneg %p117
        %p566 = pneg %p114
        %p567 = pneg %p138
        %p568 = pneg %p135
        %p569 = pneg %p159
        %p570 = pneg %p156
        %p571 = pneg %p180
        %p572 = pneg %p177
        %p573 = pneg %p201
        %p574 = pneg %p198
        %p575 = pneg %p222
        %p576 = pneg %p219
        %p577 = pneg %p243
        %p578 = pneg %p240
        %p579 = pneg %p264
        %p580 = pneg %p261
        %p581 = pneg %p285
        %p582 = pneg %p282
        %p583 = pneg %p306
        %p584 = pneg %p303
        %p585 = pneg %p327
        %p586 = pneg %p324
        %p587 = pneg %p348
        %p588 = pneg %p345
        %p589 = pneg %p374
        %p590 = pneg %p371
        %s591 = sand.u32 %s361, 1
        %s592 = scalar_lea.sflag [#allocation4], %s591
        %s593 = sand.u32 %s361, 1
        %s594 = scalar_lea.vmem [#allocation14], %s593
        %p595 = scmp.lt.s32.totalorder %s33, 1
        %s596 = scalar_select %p595, %s33, 1
        %s597 = smul.addr %s596, 4
        %s598 = smul.addr %s597, 8
        %s599 = scalar_lea.vmem %s0, %s598
        %v600 = vld [vmem:[%s599] sm:$0xff]
        %v601 = vld [vmem:[%s599 + $0x8] sm:$0xff]
        %v602 = vld [vmem:[%s599 + $0x10] sm:$0xff]
        %v603 = vld [vmem:[%s599 + $0x18] sm:$0xff]
        %v604 = vld [vmem:[%s1] sm:$0xff]
        %v605 = vld [vmem:[%s1 + $0x8] sm:$0xff]
        %v606 = vld [vmem:[%s1 + $0x10] sm:$0xff]
        %v607 = vld [vmem:[%s1 + $0x18] sm:$0xff]
        %v608 = vld [vmem:[%s1 + $0x20] sm:$0xff]
        %v609 = vld [vmem:[%s1 + $0x28] sm:$0xff]
        %v610 = vld [vmem:[%s1 + $0x30] sm:$0xff]
        %v611 = vld [vmem:[%s1 + $0x38] sm:$0xff]
        %s612 = scalar_lea.vmem %s1, 64
        %v613 = vld [vmem:[%s612] sm:$0xff]
        %v614 = vld [vmem:[%s612 + $0x8] sm:$0xff]
        %v615 = vld [vmem:[%s612 + $0x10] sm:$0xff]
        %v616 = vld [vmem:[%s612 + $0x18] sm:$0xff]
        %v617 = vld [vmem:[%s612 + $0x20] sm:$0xff]
        %v618 = vld [vmem:[%s612 + $0x28] sm:$0xff]
        %v619 = vld [vmem:[%s612 + $0x30] sm:$0xff]
        %v620 = vld [vmem:[%s612 + $0x38] sm:$0xff]
        %vm625 = vcmask 1046528
        %v626 = vrot.slane %v600, 1
        %v627 = vrot.slane %v601, 1
        %v628 = vsel %vm625, %v626, %v627
        %v629 = vrot.slane %v602, 1
        %v630 = vsel %vm625, %v627, %v629
        %v631 = vrot.slane %v603, 1
        %v632 = vsel %vm625, %v629, %v631
        %vm633 = vcmask 261120
        %v634 = vsel %vm633, %v628, 0
        %v636 = vsel %vm633, %v630, 0
        %v638 = vsel %vm633, %v632, 0
        %v640 = vsel %vm633, %v631, 0
        %642 = vmatpush.msra.mxu0 0.0
        %643 = vmatpush.msra.mxu0 0.0
        %644 = vmatpush.msra.mxu0 0.0
        %645 = vmatpush.msra.mxu0 0.0
        %646 = vmatpush.msra.mxu0 0.0
        %647 = vmatpush.msra.mxu0 0.0
        %648 = vmatpush.msra.mxu0 0.0
        %649 = vmatpush.msra.mxu0 0.0
        %650 = vmatpush.msra.mxu0 0.0
        %651 = vmatpush.msra.mxu0 0.0
        %652 = vmatpush.msra.mxu0 0.0
        %653 = vmatpush.msra.mxu0 0.0
        %654 = vmatpush.msra.mxu0 %v619
        %655 = vmatpush.msra.mxu0 %v617
        %656 = vmatpush.msra.mxu0 %v615
        %657 = vmatpush.msra.mxu0 %v613
        %658 = vmatmul.f32.gmra.mxu0 %v634
        %v659 = vpop.f32.mrf.mxu0
        %v660 = vadd.f32 0.0, %v659
        %661 = vmatmul.f32.gmra.mxu0 %v636
        %v662 = vpop.f32.mrf.mxu0
        %v663 = vadd.f32 0.0, %v662
        %664 = vmatmul.f32.gmra.mxu0 %v638
        %v665 = vpop.f32.mrf.mxu0
        %v666 = vadd.f32 0.0, %v665
        %667 = vmatmul.f32.gmra.mxu0 %v640
        %v668 = vpop.f32.mrf.mxu0
        %v669 = vadd.f32 0.0, %v668
        %670 = vdwg.mxu0
        %671 = vmatpush.msra.mxu0 0.0
        %672 = vmatpush.msra.mxu0 0.0
        %673 = vmatpush.msra.mxu0 0.0
        %674 = vmatpush.msra.mxu0 0.0
        %675 = vmatpush.msra.mxu0 0.0
        %676 = vmatpush.msra.mxu0 0.0
        %677 = vmatpush.msra.mxu0 0.0
        %678 = vmatpush.msra.mxu0 0.0
        %679 = vmatpush.msra.mxu0 0.0
        %680 = vmatpush.msra.mxu0 0.0
        %681 = vmatpush.msra.mxu0 0.0
        %682 = vmatpush.msra.mxu0 0.0
        %683 = vmatpush.msra.mxu0 %v620
        %684 = vmatpush.msra.mxu0 %v618
        %685 = vmatpush.msra.mxu0 %v616
        %686 = vmatpush.msra.mxu0 %v614
        %687 = vmatmul.f32.gmra.mxu0 %v634
        %v688 = vpop.f32.mrf.mxu0
        %v689 = vadd.f32 0.0, %v688
        %690 = vmatmul.f32.gmra.mxu0 %v636
        %v691 = vpop.f32.mrf.mxu0
        %v692 = vadd.f32 0.0, %v691
        %693 = vmatmul.f32.gmra.mxu0 %v638
        %v694 = vpop.f32.mrf.mxu0
        %v695 = vadd.f32 0.0, %v694
        %696 = vmatmul.f32.gmra.mxu0 %v640
        %v697 = vpop.f32.mrf.mxu0
        %v698 = vadd.f32 0.0, %v697
        %699 = vdwg.mxu0
        %v700 = vsel %vm633, %v600, 0
        %v702 = vsel %vm633, %v601, 0
        %v704 = vsel %vm633, %v602, 0
        %v706 = vsel %vm633, %v603, 0
        %708 = vmatpush.msra.mxu0 0.0
        %709 = vmatpush.msra.mxu0 0.0
        %710 = vmatpush.msra.mxu0 0.0
        %711 = vmatpush.msra.mxu0 0.0
        %712 = vmatpush.msra.mxu0 0.0
        %713 = vmatpush.msra.mxu0 0.0
        %714 = vmatpush.msra.mxu0 0.0
        %715 = vmatpush.msra.mxu0 0.0
        %716 = vmatpush.msra.mxu0 0.0
        %717 = vmatpush.msra.mxu0 0.0
        %718 = vmatpush.msra.mxu0 0.0
        %719 = vmatpush.msra.mxu0 0.0
        %720 = vmatpush.msra.mxu0 %v610
        %721 = vmatpush.msra.mxu0 %v608
        %722 = vmatpush.msra.mxu0 %v606
        %723 = vmatpush.msra.mxu0 %v604
        %724 = vmatmul.f32.gmra.mxu0 %v700
        %v725 = vpop.f32.mrf.mxu0
        %v726 = vadd.f32 %v660, %v725
        %727 = vmatmul.f32.gmra.mxu0 %v702
        %v728 = vpop.f32.mrf.mxu0
        %v729 = vadd.f32 %v663, %v728
        %730 = vmatmul.f32.gmra.mxu0 %v704
        %v731 = vpop.f32.mrf.mxu0
        %v732 = vadd.f32 %v666, %v731
        %733 = vmatmul.f32.gmra.mxu0 %v706
        %v734 = vpop.f32.mrf.mxu0
        %v735 = vadd.f32 %v669, %v734
        %736 = vdwg.mxu0
        %737 = vmatpush.msra.mxu0 0.0
        %738 = vmatpush.msra.mxu0 0.0
        %739 = vmatpush.msra.mxu0 0.0
        %740 = vmatpush.msra.mxu0 0.0
        %741 = vmatpush.msra.mxu0 0.0
        %742 = vmatpush.msra.mxu0 0.0
        %743 = vmatpush.msra.mxu0 0.0
        %744 = vmatpush.msra.mxu0 0.0
        %745 = vmatpush.msra.mxu0 0.0
        %746 = vmatpush.msra.mxu0 0.0
        %747 = vmatpush.msra.mxu0 0.0
        %748 = vmatpush.msra.mxu0 0.0
        %749 = vmatpush.msra.mxu0 %v611
        %750 = vmatpush.msra.mxu0 %v609
        %751 = vmatpush.msra.mxu0 %v607
        %752 = vmatpush.msra.mxu0 %v605
        %753 = vmatmul.f32.gmra.mxu0 %v700
        %v754 = vpop.f32.mrf.mxu0
        %v755 = vadd.f32 %v689, %v754
        %756 = vmatmul.f32.gmra.mxu0 %v702
        %v757 = vpop.f32.mrf.mxu0
        %v758 = vadd.f32 %v692, %v757
        %759 = vmatmul.f32.gmra.mxu0 %v704
        %v760 = vpop.f32.mrf.mxu0
        %v761 = vadd.f32 %v695, %v760
        %762 = vmatmul.f32.gmra.mxu0 %v706
        %v763 = vpop.f32.mrf.mxu0
        %v764 = vadd.f32 %v698, %v763
        %765 = vdwg.mxu0
        %s766 = scalar_lea.vmem %s1, 128
        %v767 = vld [vmem:[%s766] sm:$0xff]
        %v768 = vld [vmem:[%s766 + $0x8] sm:$0xff]
        %v769 = vld [vmem:[%s766 + $0x10] sm:$0xff]
        %v770 = vld [vmem:[%s766 + $0x18] sm:$0xff]
        %v771 = vld [vmem:[%s766 + $0x20] sm:$0xff]
        %v772 = vld [vmem:[%s766 + $0x28] sm:$0xff]
        %v773 = vld [vmem:[%s766 + $0x30] sm:$0xff]
        %v774 = vld [vmem:[%s766 + $0x38] sm:$0xff]
        %vm775 = vcmask 1045504
        %v776 = vrot.slane %v600, 2
        %v777 = vrot.slane %v601, 2
        %v778 = vsel %vm775, %v776, %v777
        %v779 = vrot.slane %v602, 2
        %v780 = vsel %vm775, %v777, %v779
        %v781 = vrot.slane %v603, 2
        %v782 = vsel %vm775, %v779, %v781
        %v783 = vsel %vm633, %v778, 0
        %v785 = vsel %vm633, %v780, 0
        %v787 = vsel %vm633, %v782, 0
        %v789 = vsel %vm633, %v781, 0
        %791 = vmatpush.msra.mxu0 0.0
        %792 = vmatpush.msra.mxu0 0.0
        %793 = vmatpush.msra.mxu0 0.0
        %794 = vmatpush.msra.mxu0 0.0
        %795 = vmatpush.msra.mxu0 0.0
        %796 = vmatpush.msra.mxu0 0.0
        %797 = vmatpush.msra.mxu0 0.0
        %798 = vmatpush.msra.mxu0 0.0
        %799 = vmatpush.msra.mxu0 0.0
        %800 = vmatpush.msra.mxu0 0.0
        %801 = vmatpush.msra.mxu0 0.0
        %802 = vmatpush.msra.mxu0 0.0
        %803 = vmatpush.msra.mxu0 %v773
        %804 = vmatpush.msra.mxu0 %v771
        %805 = vmatpush.msra.mxu0 %v769
        %806 = vmatpush.msra.mxu0 %v767
        %807 = vmatmul.f32.gmra.mxu0 %v783
        %v808 = vpop.f32.mrf.mxu0
        %v809 = vadd.f32 0.0, %v808
        %810 = vmatmul.f32.gmra.mxu0 %v785
        %v811 = vpop.f32.mrf.mxu0
        %v812 = vadd.f32 0.0, %v811
        %813 = vmatmul.f32.gmra.mxu0 %v787
        %v814 = vpop.f32.mrf.mxu0
        %v815 = vadd.f32 0.0, %v814
        %816 = vmatmul.f32.gmra.mxu0 %v789
        %v817 = vpop.f32.mrf.mxu0
        %v818 = vadd.f32 0.0, %v817
        %819 = vdwg.mxu0
        %820 = vmatpush.msra.mxu0 0.0
        %821 = vmatpush.msra.mxu0 0.0
        %822 = vmatpush.msra.mxu0 0.0
        %823 = vmatpush.msra.mxu0 0.0
        %824 = vmatpush.msra.mxu0 0.0
        %825 = vmatpush.msra.mxu0 0.0
        %826 = vmatpush.msra.mxu0 0.0
        %827 = vmatpush.msra.mxu0 0.0
        %828 = vmatpush.msra.mxu0 0.0
        %829 = vmatpush.msra.mxu0 0.0
        %830 = vmatpush.msra.mxu0 0.0
        %831 = vmatpush.msra.mxu0 0.0
        %832 = vmatpush.msra.mxu0 %v774
        %833 = vmatpush.msra.mxu0 %v772
        %834 = vmatpush.msra.mxu0 %v770
        %835 = vmatpush.msra.mxu0 %v768
        %836 = vmatmul.f32.gmra.mxu0 %v783
        %v837 = vpop.f32.mrf.mxu0
        %v838 = vadd.f32 0.0, %v837
        %839 = vmatmul.f32.gmra.mxu0 %v785
        %v840 = vpop.f32.mrf.mxu0
        %v841 = vadd.f32 0.0, %v840
        %842 = vmatmul.f32.gmra.mxu0 %v787
        %v843 = vpop.f32.mrf.mxu0
        %v844 = vadd.f32 0.0, %v843
        %845 = vmatmul.f32.gmra.mxu0 %v789
        %v846 = vpop.f32.mrf.mxu0
        %v847 = vadd.f32 0.0, %v846
        %848 = vdwg.mxu0
        %v849 = vadd.f32 %v726, %v809
        %v850 = vadd.f32 %v755, %v838
        %v851 = vadd.f32 %v729, %v812
        %v852 = vadd.f32 %v758, %v841
        %v853 = vadd.f32 %v732, %v815
        %v854 = vadd.f32 %v761, %v844
        %v855 = vadd.f32 %v735, %v818
        %v856 = vadd.f32 %v764, %v847
        %v857 = vld [vmem:[%s2] sm:$0x3]
        %v859 = vperm.slane %v857, 0
        %v860 = vperm.slane %v857, 1
        %v863 = vadd.f32 %v849, %v859
        %v864 = vadd.f32 %v850, %v860
        %v865 = vadd.f32 %v851, %v859
        %v866 = vadd.f32 %v852, %v860
        %v867 = vadd.f32 %v853, %v859
        %v868 = vadd.f32 %v854, %v860
        %v869 = vadd.f32 %v855, %v859
        %v870 = vadd.f32 %v856, %v860
        %v871 = vmax.f32 %v863, 0.0
        %v872 = vmax.f32 %v864, 0.0
        %v873 = vmax.f32 %v865, 0.0
        %v874 = vmax.f32 %v866, 0.0
        %v875 = vmax.f32 %v867, 0.0
        %v876 = vmax.f32 %v868, 0.0
        %v877 = vmax.f32 %v869, 0.0
        %v878 = vmax.f32 %v870, 0.0
        %887 = vrot.lane.b32.xlu0 %v871, 127
        %v888 = vpop.permute.xlu0 %887
        %889 = vrot.lane.b32.xlu0 %v872, 127
        %v890 = vpop.permute.xlu0 %889
        %891 = vrot.lane.b32.xlu0 %v873, 127
        %v892 = vpop.permute.xlu0 %891
        %893 = vrot.lane.b32.xlu0 %v874, 127
        %v894 = vpop.permute.xlu0 %893
        %895 = vrot.lane.b32.xlu0 %v875, 127
        %v896 = vpop.permute.xlu0 %895
        %897 = vrot.lane.b32.xlu0 %v876, 127
        %v898 = vpop.permute.xlu0 %897
        %899 = vrot.lane.b32.xlu0 %v877, 127
        %v900 = vpop.permute.xlu0 %899
        %901 = vrot.lane.b32.xlu0 %v878, 127
        %v902 = vpop.permute.xlu0 %901
        %vm903 = vcmask 1039360
        %v904 = vsel %vm903, %v888, %v890
        %v905 = vsel %vm903, %v892, %v894
        %v906 = vsel %vm903, %v896, %v898
        %v907 = vsel %vm903, %v900, %v902
        %v916 = vmax.f32 %v871, %v904
        %v917 = vmax.f32 %v872, %v890
        %v918 = vmax.f32 %v873, %v905
        %v919 = vmax.f32 %v874, %v894
        %v920 = vmax.f32 %v875, %v906
        %v921 = vmax.f32 %v876, %v898
        %v922 = vmax.f32 %v877, %v907
        %v923 = vmax.f32 %v878, %v902
        %v932 = vrot.slane %v916, 1
        %v933 = vrot.slane %v918, 1
        %v934 = vsel %vm625, %v932, %v933
        %v935 = vrot.slane %v917, 1
        %v936 = vrot.slane %v919, 1
        %v937 = vsel %vm625, %v935, %v936
        %v938 = vrot.slane %v920, 1
        %v939 = vsel %vm625, %v933, %v938
        %v940 = vrot.slane %v921, 1
        %v941 = vsel %vm625, %v936, %v940
        %v942 = vrot.slane %v922, 1
        %v943 = vsel %vm625, %v938, %v942
        %v944 = vrot.slane %v923, 1
        %v945 = vsel %vm625, %v940, %v944
        %v954 = vmax.f32 %v916, %v934
        %v955 = vmax.f32 %v917, %v937
        %v956 = vmax.f32 %v918, %v939
        %v957 = vmax.f32 %v919, %v941
        %v958 = vmax.f32 %v920, %v943
        %v959 = vmax.f32 %v921, %v945
        %v960 = vmax.f32 %v922, %v942
        %v961 = vmax.f32 %v923, %v944
        %v962 = vld [vmem:[#allocation2] sm:$0xff]
        %v963 = vld [vmem:[#allocation2 + $0x8] sm:$0x7f]
        %v964 = vld [vmem:[%s4] sm:$0xff]
        %v965 = vld [vmem:[%s4 + $0x8] sm:$0xff]
        %v966 = vld [vmem:[%s4 + $0x10] sm:$0xff]
        %v967 = vld [vmem:[%s4 + $0x18] sm:$0xff]
        %v968 = vld [vmem:[%s4 + $0x20] sm:$0xff]
        %v969 = vld [vmem:[%s4 + $0x28] sm:$0xff]
        %v970 = vld [vmem:[%s4 + $0x30] sm:$0xff]
        %v971 = vld [vmem:[%s4 + $0x38] sm:$0xff]
        %v972 = vld [vmem:[%s4 + $0x40] sm:$0xff]
        %v973 = vld [vmem:[%s4 + $0x48] sm:$0xff]
        %v974 = vld [vmem:[%s4 + $0x50] sm:$0xff]
        %v975 = vld [vmem:[%s4 + $0x58] sm:$0xff]
        %v976 = vld [vmem:[%s4 + $0x60] sm:$0xff]
        %v977 = vld [vmem:[%s4 + $0x68] sm:$0xff]
        %v978 = vld [vmem:[%s4 + $0x70] sm:$0xff]
        %v979 = vld [vmem:[%s4 + $0x78] sm:$0xff]
        %v980 = vld [vmem:[%s4 + $0x80] sm:$0xff]
        %v981 = vld [vmem:[%s4 + $0x88] sm:$0xff]
        %v982 = vld [vmem:[%s4 + $0x90] sm:$0xff]
        %v983 = vld [vmem:[%s4 + $0x98] sm:$0xff]
        %v984 = vld [vmem:[%s4 + $0xa0] sm:$0xff]
        %v985 = vld [vmem:[%s4 + $0xa8] sm:$0xff]
        %v986 = vld [vmem:[%s4 + $0xb0] sm:$0x7]
        %vm987 = vcmask 416768
        %v989 = vsel %vm987, %v955, 0
        %v992 = vsel %vm987, %v957, 0
        %v995 = vsel %vm987, %v959, 0
        %v998 = vsel %vm987, %v961, 0
        %vm1000 = vcmask 1042432
        %v1002 = vsel %vm1000, %v986, 0
        %1004 = vmatpush.msra.mxu0 %v979
        %1005 = vmatpush.msra.mxu0 %v978
        %1006 = vmatpush.msra.mxu0 %v977
        %1007 = vmatpush.msra.mxu0 %v976
        %1008 = vmatpush.msra.mxu0 %v975
        %1009 = vmatpush.msra.mxu0 %v974
        %1010 = vmatpush.msra.mxu0 %v973
        %1011 = vmatpush.msra.mxu0 %v972
        %1012 = vmatpush.msra.mxu0 %v971
        %1013 = vmatpush.msra.mxu0 %v970
        %1014 = vmatpush.msra.mxu0 %v969
        %1015 = vmatpush.msra.mxu0 %v968
        %1016 = vmatpush.msra.mxu0 %v967
        %1017 = vmatpush.msra.mxu0 %v966
        %1018 = vmatpush.msra.mxu0 %v965
        %1019 = vmatpush.msra.mxu0 %v964
        %1020 = vmatmul.f32.gmra.mxu0 %v954
        %v1021 = vpop.f32.mrf.mxu0
        %v1022 = vadd.f32 0.0, %v1021
        %1023 = vmatmul.f32.gmra.mxu0 %v956
        %v1024 = vpop.f32.mrf.mxu0
        %v1025 = vadd.f32 0.0, %v1024
        %1026 = vmatmul.f32.gmra.mxu0 %v958
        %v1027 = vpop.f32.mrf.mxu0
        %v1028 = vadd.f32 0.0, %v1027
        %1029 = vmatmul.f32.gmra.mxu0 %v960
        %v1030 = vpop.f32.mrf.mxu0
        %v1031 = vadd.f32 0.0, %v1030
        %1032 = vdwg.mxu0
        %1033 = vmatpush.msra.mxu0 0.0
        %1034 = vmatpush.msra.mxu0 0.0
        %1035 = vmatpush.msra.mxu0 0.0
        %1036 = vmatpush.msra.mxu0 0.0
        %1037 = vmatpush.msra.mxu0 0.0
        %1038 = vmatpush.msra.mxu0 0.0
        %1039 = vmatpush.msra.mxu0 0.0
        %1040 = vmatpush.msra.mxu0 0.0
        %1041 = vmatpush.msra.mxu0 0.0
        %1042 = vmatpush.msra.mxu0 %v1002
        %1043 = vmatpush.msra.mxu0 %v985
        %1044 = vmatpush.msra.mxu0 %v984
        %1045 = vmatpush.msra.mxu0 %v983
        %1046 = vmatpush.msra.mxu0 %v982
        %1047 = vmatpush.msra.mxu0 %v981
        %1048 = vmatpush.msra.mxu0 %v980
        %1049 = vmatmul.f32.gmra.mxu0 %v989
        %v1050 = vpop.f32.mrf.mxu0
        %v1051 = vadd.f32 %v1022, %v1050
        %1052 = vmatmul.f32.gmra.mxu0 %v992
        %v1053 = vpop.f32.mrf.mxu0
        %v1054 = vadd.f32 %v1025, %v1053
        %1055 = vmatmul.f32.gmra.mxu0 %v995
        %v1056 = vpop.f32.mrf.mxu0
        %v1057 = vadd.f32 %v1028, %v1056
        %1058 = vmatmul.f32.gmra.mxu0 %v998
        %v1059 = vpop.f32.mrf.mxu0
        %v1060 = vadd.f32 %v1031, %v1059
        %1061 = vdwg.mxu0
        %vm1062 = vcmask 236544
        %v1064 = vsel %vm1062, %v962, 0
        %v1067 = vsel %vm1062, %v963, 0
        %vm1069 = vcmask 1044480
        %v1071 = vsel %vm1069, %v1060, 0
        %1073 = vmatpush.msra.mxu0 0.0
        %1074 = vmatpush.msra.mxu0 0.0
        %1075 = vmatpush.msra.mxu0 0.0
        %1076 = vmatpush.msra.mxu0 0.0
        %1077 = vmatpush.msra.mxu0 0.0
        %1078 = vmatpush.msra.mxu0 0.0
        %1079 = vmatpush.msra.mxu0 0.0
        %1080 = vmatpush.msra.mxu0 0.0
        %1081 = vmatpush.msra.mxu0 0.0
        %1082 = vmatpush.msra.mxu0 0.0
        %1083 = vmatpush.msra.mxu0 0.0
        %1084 = vmatpush.msra.mxu0 0.0
        %1085 = vmatpush.msra.mxu0 %v1071
        %1086 = vmatpush.msra.mxu0 %v1057
        %1087 = vmatpush.msra.mxu0 %v1054
        %1088 = vmatpush.msra.mxu0 %v1051
        %1089 = vmatmul.f32.gmra.mxu0 %v1064
        %v1090 = vpop.f32.mrf.mxu0
        %v1091 = vadd.f32 0.0, %v1090
        %1092 = vmatmul.f32.gmra.mxu0 %v1067
        %v1093 = vpop.f32.mrf.mxu0
        %v1094 = vadd.f32 0.0, %v1093
        %1095 = vdwg.mxu0
        %v1096 = vld [vmem:[#allocation5] sm:$0xff]
        %v1097 = vld [vmem:[#allocation5 + $0x8] sm:$0xff]
        %v1098 = vld [vmem:[#allocation5 + $0x10] sm:$0xff]
        %v1099 = vld [vmem:[#allocation5 + $0x18] sm:$0xff]
        %v1100 = vld [vmem:[#allocation5 + $0x20] sm:$0xff]
        %v1101 = vld [vmem:[#allocation5 + $0x28] sm:$0xff]
        %v1102 = vld [vmem:[#allocation5 + $0x30] sm:$0xff]
        %v1103 = vld [vmem:[#allocation5 + $0x38] sm:$0xff]
        %v1104 = vld [vmem:[#allocation5 + $0x40] sm:$0xff]
        %v1105 = vld [vmem:[#allocation5 + $0x48] sm:$0xff]
        %v1106 = vld [vmem:[#allocation5 + $0x50] sm:$0xff]
        %v1107 = vld [vmem:[#allocation5 + $0x58] sm:$0xff]
        %v1108 = vld [vmem:[#allocation5 + $0x60] sm:$0xff]
        %v1109 = vld [vmem:[#allocation5 + $0x68] sm:$0xff]
        %v1110 = vld [vmem:[#allocation5 + $0x70] sm:$0xff]
        %v1111 = vld [vmem:[#allocation5 + $0x78] sm:$0xff]
        %v1112 = vld [vmem:[#allocation5 + $0x80] sm:$0xff]
        %v1113 = vld [vmem:[#allocation5 + $0x88] sm:$0xff]
        %v1114 = vld [vmem:[#allocation5 + $0x90] sm:$0xff]
        %v1115 = vld [vmem:[#allocation5 + $0x98] sm:$0xff]
        %v1116 = vld [vmem:[#allocation5 + $0xa0] sm:$0xff]
        %v1117 = vld [vmem:[#allocation5 + $0xa8] sm:$0xff]
        %v1118 = vld [vmem:[#allocation5 + $0xb0] sm:$0x3]
        %v1119 = vld [vmem:[#allocation5 + $0xb8] sm:$0x3]
        %s1120 = scalar_lea.vmem [#allocation5], 192
        %v1121 = vld [vmem:[%s1120] sm:$0xff]
        %v1122 = vld [vmem:[%s1120 + $0x8] sm:$0xff]
        %v1123 = vld [vmem:[%s1120 + $0x10] sm:$0xff]
        %v1124 = vld [vmem:[%s1120 + $0x18] sm:$0xff]
        %v1125 = vld [vmem:[%s1120 + $0x20] sm:$0xff]
        %v1126 = vld [vmem:[%s1120 + $0x28] sm:$0xff]
        %v1127 = vld [vmem:[%s1120 + $0x30] sm:$0xff]
        %v1128 = vld [vmem:[%s1120 + $0x38] sm:$0xff]
        %v1129 = vld [vmem:[%s1120 + $0x40] sm:$0xff]
        %v1130 = vld [vmem:[%s1120 + $0x48] sm:$0xff]
        %v1131 = vld [vmem:[%s1120 + $0x50] sm:$0xff]
        %v1132 = vld [vmem:[%s1120 + $0x58] sm:$0xff]
        %v1133 = vld [vmem:[%s1120 + $0x60] sm:$0xff]
        %v1134 = vld [vmem:[%s1120 + $0x68] sm:$0xff]
        %v1135 = vld [vmem:[%s1120 + $0x70] sm:$0xff]
        %v1136 = vld [vmem:[%s1120 + $0x78] sm:$0xff]
        %v1137 = vld [vmem:[%s1120 + $0x80] sm:$0xff]
        %v1138 = vld [vmem:[%s1120 + $0x88] sm:$0xff]
        %v1139 = vld [vmem:[%s1120 + $0x90] sm:$0xff]
        %v1140 = vld [vmem:[%s1120 + $0x98] sm:$0xff]
        %v1141 = vld [vmem:[%s1120 + $0xa0] sm:$0xff]
        %v1142 = vld [vmem:[%s1120 + $0xa8] sm:$0xff]
        %v1143 = vld [vmem:[%s1120 + $0xb0] sm:$0x3]
        %v1144 = vld [vmem:[%s1120 + $0xb8] sm:$0x3]
        %v1147 = vrot.slane %v1091, 1
        %v1148 = vrot.slane %v1094, 1
        %v1149 = vsel %vm625, %v1147, %v1148
        %vm1150 = vcmask 736256
        %v1151 = vsel %vm1150, %v1149, 0
        %v1153 = vsel %vm1150, %v1148, 0
        %vm1155 = vcmask 1041408
        %v1157 = vsel %vm1155, %v1143, 0
        %v1160 = vsel %vm1155, %v1144, 0
        %1162 = vmatpush.msra.mxu0 0.0
        %1163 = vmatpush.msra.mxu0 0.0
        %1164 = vmatpush.msra.mxu0 0.0
        %1165 = vmatpush.msra.mxu0 0.0
        %1166 = vmatpush.msra.mxu0 %v1157
        %1167 = vmatpush.msra.mxu0 %v1141
        %1168 = vmatpush.msra.mxu0 %v1139
        %1169 = vmatpush.msra.mxu0 %v1137
        %1170 = vmatpush.msra.mxu0 %v1135
        %1171 = vmatpush.msra.mxu0 %v1133
        %1172 = vmatpush.msra.mxu0 %v1131
        %1173 = vmatpush.msra.mxu0 %v1129
        %1174 = vmatpush.msra.mxu0 %v1127
        %1175 = vmatpush.msra.mxu0 %v1125
        %1176 = vmatpush.msra.mxu0 %v1123
        %1177 = vmatpush.msra.mxu0 %v1121
        %1178 = vmatmul.f32.gmra.mxu0 %v1151
        %v1179 = vpop.f32.mrf.mxu0
        %v1180 = vadd.f32 0.0, %v1179
        %1181 = vmatmul.f32.gmra.mxu0 %v1153
        %v1182 = vpop.f32.mrf.mxu0
        %v1183 = vadd.f32 0.0, %v1182
        %1184 = vdwg.mxu0
        %1185 = vmatpush.msra.mxu0 0.0
        %1186 = vmatpush.msra.mxu0 0.0
        %1187 = vmatpush.msra.mxu0 0.0
        %1188 = vmatpush.msra.mxu0 0.0
        %1189 = vmatpush.msra.mxu0 %v1160
        %1190 = vmatpush.msra.mxu0 %v1142
        %1191 = vmatpush.msra.mxu0 %v1140
        %1192 = vmatpush.msra.mxu0 %v1138
        %1193 = vmatpush.msra.mxu0 %v1136
        %1194 = vmatpush.msra.mxu0 %v1134
        %1195 = vmatpush.msra.mxu0 %v1132
        %1196 = vmatpush.msra.mxu0 %v1130
        %1197 = vmatpush.msra.mxu0 %v1128
        %1198 = vmatpush.msra.mxu0 %v1126
        %1199 = vmatpush.msra.mxu0 %v1124
        %1200 = vmatpush.msra.mxu0 %v1122
        %1201 = vmatmul.f32.gmra.mxu0 %v1151
        %v1202 = vpop.f32.mrf.mxu0
        %v1203 = vadd.f32 0.0, %v1202
        %1204 = vmatmul.f32.gmra.mxu0 %v1153
        %v1205 = vpop.f32.mrf.mxu0
        %v1206 = vadd.f32 0.0, %v1205
        %1207 = vdwg.mxu0
        %v1208 = vsel %vm1150, %v1091, 0
        %v1210 = vsel %vm1150, %v1094, 0
        %v1213 = vsel %vm1155, %v1118, 0
        %v1216 = vsel %vm1155, %v1119, 0
        %1218 = vmatpush.msra.mxu0 0.0
        %1219 = vmatpush.msra.mxu0 0.0
        %1220 = vmatpush.msra.mxu0 0.0
        %1221 = vmatpush.msra.mxu0 0.0
        %1222 = vmatpush.msra.mxu0 %v1213
        %1223 = vmatpush.msra.mxu0 %v1116
        %1224 = vmatpush.msra.mxu0 %v1114
        %1225 = vmatpush.msra.mxu0 %v1112
        %1226 = vmatpush.msra.mxu0 %v1110
        %1227 = vmatpush.msra.mxu0 %v1108
        %1228 = vmatpush.msra.mxu0 %v1106
        %1229 = vmatpush.msra.mxu0 %v1104
        %1230 = vmatpush.msra.mxu0 %v1102
        %1231 = vmatpush.msra.mxu0 %v1100
        %1232 = vmatpush.msra.mxu0 %v1098
        %1233 = vmatpush.msra.mxu0 %v1096
        %1234 = vmatmul.f32.gmra.mxu0 %v1208
        %v1235 = vpop.f32.mrf.mxu0
        %v1236 = vadd.f32 %v1180, %v1235
        %1237 = vmatmul.f32.gmra.mxu0 %v1210
        %v1238 = vpop.f32.mrf.mxu0
        %v1239 = vadd.f32 %v1183, %v1238
        %1240 = vdwg.mxu0
        %1241 = vmatpush.msra.mxu0 0.0
        %1242 = vmatpush.msra.mxu0 0.0
        %1243 = vmatpush.msra.mxu0 0.0
        %1244 = vmatpush.msra.mxu0 0.0
        %1245 = vmatpush.msra.mxu0 %v1216
        %1246 = vmatpush.msra.mxu0 %v1117
        %1247 = vmatpush.msra.mxu0 %v1115
        %1248 = vmatpush.msra.mxu0 %v1113
        %1249 = vmatpush.msra.mxu0 %v1111
        %1250 = vmatpush.msra.mxu0 %v1109
        %1251 = vmatpush.msra.mxu0 %v1107
        %1252 = vmatpush.msra.mxu0 %v1105
        %1253 = vmatpush.msra.mxu0 %v1103
        %1254 = vmatpush.msra.mxu0 %v1101
        %1255 = vmatpush.msra.mxu0 %v1099
        %1256 = vmatpush.msra.mxu0 %v1097
        %1257 = vmatmul.f32.gmra.mxu0 %v1208
        %v1258 = vpop.f32.mrf.mxu0
        %v1259 = vadd.f32 %v1203, %v1258
        %1260 = vmatmul.f32.gmra.mxu0 %v1210
        %v1261 = vpop.f32.mrf.mxu0
        %v1262 = vadd.f32 %v1206, %v1261
        %1263 = vdwg.mxu0
        %s1264 = scalar_lea.vmem [#allocation5], 384
        %v1265 = vld [vmem:[%s1264] sm:$0xff]
        %v1266 = vld [vmem:[%s1264 + $0x8] sm:$0xff]
        %v1267 = vld [vmem:[%s1264 + $0x10] sm:$0xff]
        %v1268 = vld [vmem:[%s1264 + $0x18] sm:$0xff]
        %v1269 = vld [vmem:[%s1264 + $0x20] sm:$0xff]
        %v1270 = vld [vmem:[%s1264 + $0x28] sm:$0xff]
        %v1271 = vld [vmem:[%s1264 + $0x30] sm:$0xff]
        %v1272 = vld [vmem:[%s1264 + $0x38] sm:$0xff]
        %v1273 = vld [vmem:[%s1264 + $0x40] sm:$0xff]
        %v1274 = vld [vmem:[%s1264 + $0x48] sm:$0xff]
        %v1275 = vld [vmem:[%s1264 + $0x50] sm:$0xff]
        %v1276 = vld [vmem:[%s1264 + $0x58] sm:$0xff]
        %v1277 = vld [vmem:[%s1264 + $0x60] sm:$0xff]
        %v1278 = vld [vmem:[%s1264 + $0x68] sm:$0xff]
        %v1279 = vld [vmem:[%s1264 + $0x70] sm:$0xff]
        %v1280 = vld [vmem:[%s1264 + $0x78] sm:$0xff]
        %v1281 = vld [vmem:[%s1264 + $0x80] sm:$0xff]
        %v1282 = vld [vmem:[%s1264 + $0x88] sm:$0xff]
        %v1283 = vld [vmem:[%s1264 + $0x90] sm:$0xff]
        %v1284 = vld [vmem:[%s1264 + $0x98] sm:$0xff]
        %v1285 = vld [vmem:[%s1264 + $0xa0] sm:$0xff]
        %v1286 = vld [vmem:[%s1264 + $0xa8] sm:$0xff]
        %v1287 = vld [vmem:[%s1264 + $0xb0] sm:$0x3]
        %v1288 = vld [vmem:[%s1264 + $0xb8] sm:$0x3]
        %v1289 = vrot.slane %v1091, 2
        %v1290 = vrot.slane %v1094, 2
        %v1291 = vsel %vm775, %v1289, %v1290
        %v1292 = vsel %vm1150, %v1291, 0
        %v1294 = vsel %vm1150, %v1290, 0
        %v1297 = vsel %vm1155, %v1287, 0
        %v1300 = vsel %vm1155, %v1288, 0
        %1302 = vmatpush.msra.mxu0 0.0
        %1303 = vmatpush.msra.mxu0 0.0
        %1304 = vmatpush.msra.mxu0 0.0
        %1305 = vmatpush.msra.mxu0 0.0
        %1306 = vmatpush.msra.mxu0 %v1297
        %1307 = vmatpush.msra.mxu0 %v1285
        %1308 = vmatpush.msra.mxu0 %v1283
        %1309 = vmatpush.msra.mxu0 %v1281
        %1310 = vmatpush.msra.mxu0 %v1279
        %1311 = vmatpush.msra.mxu0 %v1277
        %1312 = vmatpush.msra.mxu0 %v1275
        %1313 = vmatpush.msra.mxu0 %v1273
        %1314 = vmatpush.msra.mxu0 %v1271
        %1315 = vmatpush.msra.mxu0 %v1269
        %1316 = vmatpush.msra.mxu0 %v1267
        %1317 = vmatpush.msra.mxu0 %v1265
        %1318 = vmatmul.f32.gmra.mxu0 %v1292
        %v1319 = vpop.f32.mrf.mxu0
        %v1320 = vadd.f32 0.0, %v1319
        %1321 = vmatmul.f32.gmra.mxu0 %v1294
        %v1322 = vpop.f32.mrf.mxu0
        %v1323 = vadd.f32 0.0, %v1322
        %1324 = vdwg.mxu0
        %1325 = vmatpush.msra.mxu0 0.0
        %1326 = vmatpush.msra.mxu0 0.0
        %1327 = vmatpush.msra.mxu0 0.0
        %1328 = vmatpush.msra.mxu0 0.0
        %1329 = vmatpush.msra.mxu0 %v1300
        %1330 = vmatpush.msra.mxu0 %v1286
        %1331 = vmatpush.msra.mxu0 %v1284
        %1332 = vmatpush.msra.mxu0 %v1282
        %1333 = vmatpush.msra.mxu0 %v1280
        %1334 = vmatpush.msra.mxu0 %v1278
        %1335 = vmatpush.msra.mxu0 %v1276
        %1336 = vmatpush.msra.mxu0 %v1274
        %1337 = vmatpush.msra.mxu0 %v1272
        %1338 = vmatpush.msra.mxu0 %v1270
        %1339 = vmatpush.msra.mxu0 %v1268
        %1340 = vmatpush.msra.mxu0 %v1266
        %1341 = vmatmul.f32.gmra.mxu0 %v1292
        %v1342 = vpop.f32.mrf.mxu0
        %v1343 = vadd.f32 0.0, %v1342
        %1344 = vmatmul.f32.gmra.mxu0 %v1294
        %v1345 = vpop.f32.mrf.mxu0
        %v1346 = vadd.f32 0.0, %v1345
        %1347 = vdwg.mxu0
        %v1348 = vadd.f32 %v1236, %v1320
        %v1349 = vadd.f32 %v1259, %v1343
        %v1350 = vadd.f32 %v1239, %v1323
        %v1351 = vadd.f32 %v1262, %v1346
        %v1352 = vld [vmem:[%s6] sm:$0x3]
        %v1354 = vperm.slane %v1352, 0
        %v1355 = vperm.slane %v1352, 1
        %v1358 = vadd.f32 %v1348, %v1354
        %v1359 = vadd.f32 %v1349, %v1355
        %v1360 = vadd.f32 %v1350, %v1354
        %v1361 = vadd.f32 %v1351, %v1355
        %v1362 = vmax.f32 %v1358, 0.0
        %v1363 = vmax.f32 %v1359, 0.0
        %v1364 = vmax.f32 %v1360, 0.0
        %v1365 = vmax.f32 %v1361, 0.0
        %1370 = vrot.lane.b32.xlu0 %v1362, 127
        %v1371 = vpop.permute.xlu0 %1370
        %1372 = vrot.lane.b32.xlu0 %v1363, 127
        %v1373 = vpop.permute.xlu0 %1372
        %1374 = vrot.lane.b32.xlu0 %v1364, 127
        %v1375 = vpop.permute.xlu0 %1374
        %1376 = vrot.lane.b32.xlu0 %v1365, 127
        %v1377 = vpop.permute.xlu0 %1376
        %v1378 = vsel %vm903, %v1371, %v1373
        %v1379 = vsel %vm903, %v1375, %v1377
        %v1384 = vmax.f32 %v1362, %v1378
        %v1385 = vmax.f32 %v1363, %v1373
        %v1386 = vmax.f32 %v1364, %v1379
        %v1387 = vmax.f32 %v1365, %v1377
        %v1392 = vrot.slane %v1384, 1
        %v1393 = vrot.slane %v1386, 1
        %v1394 = vsel %vm625, %v1392, %v1393
        %v1395 = vrot.slane %v1385, 1
        %v1396 = vrot.slane %v1387, 1
        %v1397 = vsel %vm625, %v1395, %v1396
        %v1402 = vmax.f32 %v1384, %v1394
        %v1403 = vmax.f32 %v1385, %v1397
        %v1404 = vmax.f32 %v1386, %v1393
        %v1405 = vmax.f32 %v1387, %v1396
        %v1406 = vld [vmem:[#allocation7] sm:$0x3f]
        %v1407 = vld [vmem:[%s8] sm:$0xff]
        %v1408 = vld [vmem:[%s8 + $0x8] sm:$0xff]
        %v1409 = vld [vmem:[%s8 + $0x10] sm:$0xff]
        %v1410 = vld [vmem:[%s8 + $0x18] sm:$0xff]
        %v1411 = vld [vmem:[%s8 + $0x20] sm:$0xff]
        %v1412 = vld [vmem:[%s8 + $0x28] sm:$0xff]
        %v1413 = vld [vmem:[%s8 + $0x30] sm:$0xff]
        %v1414 = vld [vmem:[%s8 + $0x38] sm:$0xff]
        %v1415 = vld [vmem:[%s8 + $0x40] sm:$0xff]
        %v1416 = vld [vmem:[%s8 + $0x48] sm:$0xff]
        %v1417 = vld [vmem:[%s8 + $0x50] sm:$0xff]
        %v1418 = vld [vmem:[%s8 + $0x58] sm:$0xff]
        %v1419 = vld [vmem:[%s8 + $0x60] sm:$0xff]
        %v1420 = vld [vmem:[%s8 + $0x68] sm:$0xff]
        %v1421 = vld [vmem:[%s8 + $0x70] sm:$0xff]
        %v1422 = vld [vmem:[%s8 + $0x78] sm:$0xff]
        %v1423 = vld [vmem:[%s8 + $0x80] sm:$0xff]
        %v1424 = vld [vmem:[%s8 + $0x88] sm:$0xff]
        %v1425 = vld [vmem:[%s8 + $0x90] sm:$0xff]
        %v1426 = vld [vmem:[%s8 + $0x98] sm:$0xff]
        %v1427 = vld [vmem:[%s8 + $0xa0] sm:$0xff]
        %v1428 = vld [vmem:[%s8 + $0xa8] sm:$0xff]
        %v1429 = vld [vmem:[%s8 + $0xb0] sm:$0xff]
        %v1430 = vld [vmem:[%s8 + $0xb8] sm:$0xff]
        %v1431 = vld [vmem:[%s8 + $0xc0] sm:$0xff]
        %v1432 = vld [vmem:[%s8 + $0xc8] sm:$0x7f]
        %vm1433 = vcmask 646144
        %v1435 = vsel %vm1433, %v1403, 0
        %v1438 = vsel %vm1433, %v1405, 0
        %v1441 = vsel %vm625, %v1432, 0
        %1443 = vmatpush.msra.mxu0 %v1422
        %1444 = vmatpush.msra.mxu0 %v1421
        %1445 = vmatpush.msra.mxu0 %v1420
        %1446 = vmatpush.msra.mxu0 %v1419
        %1447 = vmatpush.msra.mxu0 %v1418
        %1448 = vmatpush.msra.mxu0 %v1417
        %1449 = vmatpush.msra.mxu0 %v1416
        %1450 = vmatpush.msra.mxu0 %v1415
        %1451 = vmatpush.msra.mxu0 %v1414
        %1452 = vmatpush.msra.mxu0 %v1413
        %1453 = vmatpush.msra.mxu0 %v1412
        %1454 = vmatpush.msra.mxu0 %v1411
        %1455 = vmatpush.msra.mxu0 %v1410
        %1456 = vmatpush.msra.mxu0 %v1409
        %1457 = vmatpush.msra.mxu0 %v1408
        %1458 = vmatpush.msra.mxu0 %v1407
        %1459 = vmatmul.f32.gmra.mxu0 %v1402
        %v1460 = vpop.f32.mrf.mxu0
        %v1461 = vadd.f32 0.0, %v1460
        %1462 = vmatmul.f32.gmra.mxu0 %v1404
        %v1463 = vpop.f32.mrf.mxu0
        %v1464 = vadd.f32 0.0, %v1463
        %1465 = vdwg.mxu0
        %1466 = vmatpush.msra.mxu0 0.0
        %1467 = vmatpush.msra.mxu0 0.0
        %1468 = vmatpush.msra.mxu0 0.0
        %1469 = vmatpush.msra.mxu0 0.0
        %1470 = vmatpush.msra.mxu0 0.0
        %1471 = vmatpush.msra.mxu0 0.0
        %1472 = vmatpush.msra.mxu0 %v1441
        %1473 = vmatpush.msra.mxu0 %v1431
        %1474 = vmatpush.msra.mxu0 %v1430
        %1475 = vmatpush.msra.mxu0 %v1429
        %1476 = vmatpush.msra.mxu0 %v1428
        %1477 = vmatpush.msra.mxu0 %v1427
        %1478 = vmatpush.msra.mxu0 %v1426
        %1479 = vmatpush.msra.mxu0 %v1425
        %1480 = vmatpush.msra.mxu0 %v1424
        %1481 = vmatpush.msra.mxu0 %v1423
        %1482 = vmatmul.f32.gmra.mxu0 %v1435
        %v1483 = vpop.f32.mrf.mxu0
        %v1484 = vadd.f32 %v1461, %v1483
        %1485 = vmatmul.f32.gmra.mxu0 %v1438
        %v1486 = vpop.f32.mrf.mxu0
        %v1487 = vadd.f32 %v1464, %v1486
        %1488 = vdwg.mxu0
        %vm1489 = vcmask 97280
        %v1491 = vsel %vm1489, %v1406, 0
        %vm1493 = vcmask 1043456
        %v1495 = vsel %vm1493, %v1487, 0
        %1497 = vmatpush.msra.mxu0 0.0
        %1498 = vmatpush.msra.mxu0 0.0
        %1499 = vmatpush.msra.mxu0 0.0
        %1500 = vmatpush.msra.mxu0 0.0
        %1501 = vmatpush.msra.mxu0 0.0
        %1502 = vmatpush.msra.mxu0 0.0
        %1503 = vmatpush.msra.mxu0 0.0
        %1504 = vmatpush.msra.mxu0 0.0
        %1505 = vmatpush.msra.mxu0 0.0
        %1506 = vmatpush.msra.mxu0 0.0
        %1507 = vmatpush.msra.mxu0 0.0
        %1508 = vmatpush.msra.mxu0 0.0
        %1509 = vmatpush.msra.mxu0 0.0
        %1510 = vmatpush.msra.mxu0 0.0
        %1511 = vmatpush.msra.mxu0 %v1495
        %1512 = vmatpush.msra.mxu0 %v1484
        %1513 = vmatmul.f32.gmra.mxu0 %v1491
        %v1514 = vpop.f32.mrf.mxu0
        %v1515 = vadd.f32 0.0, %v1514
        %1516 = vdwg.mxu0
        %v1517 = vld [vmem:[#allocation10] sm:$0x1]
        %v1518 = vld [vmem:[#allocation8] sm:$0xff]
        %v1519 = vld [vmem:[#allocation8 + $0x8] sm:$0xff]
        %v1520 = vld [vmem:[#allocation8 + $0x10] sm:$0xff]
        %v1521 = vld [vmem:[#allocation8 + $0x18] sm:$0xff]
        %v1522 = vld [vmem:[#allocation8 + $0x20] sm:$0xff]
        %v1523 = vld [vmem:[#allocation8 + $0x28] sm:$0xff]
        %v1524 = vld [vmem:[#allocation8 + $0x30] sm:$0xff]
        %v1525 = vld [vmem:[#allocation8 + $0x38] sm:$0xff]
        %v1526 = vld [vmem:[#allocation8 + $0x40] sm:$0xff]
        %v1527 = vld [vmem:[#allocation8 + $0x48] sm:$0xff]
        %v1528 = vld [vmem:[#allocation8 + $0x50] sm:$0xff]
        %v1529 = vld [vmem:[#allocation8 + $0x58] sm:$0xff]
        %vm1530 = vcmask 785408
        %v1532 = vsel %vm1530, %v1515, 0
        %1534 = vmatpush.msra.mxu0 0.0
        %1535 = vmatpush.msra.mxu0 0.0
        %1536 = vmatpush.msra.mxu0 0.0
        %1537 = vmatpush.msra.mxu0 0.0
        %1538 = vmatpush.msra.mxu0 %v1529
        %1539 = vmatpush.msra.mxu0 %v1528
        %1540 = vmatpush.msra.mxu0 %v1527
        %1541 = vmatpush.msra.mxu0 %v1526
        %1542 = vmatpush.msra.mxu0 %v1525
        %1543 = vmatpush.msra.mxu0 %v1524
        %1544 = vmatpush.msra.mxu0 %v1523
        %1545 = vmatpush.msra.mxu0 %v1522
        %1546 = vmatpush.msra.mxu0 %v1521
        %1547 = vmatpush.msra.mxu0 %v1520
        %1548 = vmatpush.msra.mxu0 %v1519
        %1549 = vmatpush.msra.mxu0 %v1518
        %1550 = vmatmul.f32.gmra.mxu0 %v1532
        %v1551 = vpop.f32.mrf.mxu0
        %v1552 = vadd.f32 0.0, %v1551
        %1553 = vdwg.mxu0
        %v1554 = vadd.f32 %v1517, %v1552
        %s1555 = scalar_lea.vmem [#allocation8], 96
        %v1556 = vld [vmem:[%s1555] sm:$0xff]
        %v1557 = vld [vmem:[%s1555 + $0x8] sm:$0xff]
        %v1558 = vld [vmem:[%s1555 + $0x10] sm:$0xff]
        %v1559 = vld [vmem:[%s1555 + $0x18] sm:$0xff]
        %v1560 = vld [vmem:[%s1555 + $0x20] sm:$0xff]
        %v1561 = vld [vmem:[%s1555 + $0x28] sm:$0xff]
        %v1562 = vld [vmem:[%s1555 + $0x30] sm:$0xff]
        %v1563 = vld [vmem:[%s1555 + $0x38] sm:$0xff]
        %v1564 = vld [vmem:[%s1555 + $0x40] sm:$0xff]
        %v1565 = vld [vmem:[%s1555 + $0x48] sm:$0xff]
        %v1566 = vld [vmem:[%s1555 + $0x50] sm:$0xff]
        %v1567 = vld [vmem:[%s1555 + $0x58] sm:$0xff]
        %v1568 = vrot.slane %v1515, 1
        %v1569 = vsel %vm1530, %v1568, 0
        %1571 = vmatpush.msra.mxu0 0.0
        %1572 = vmatpush.msra.mxu0 0.0
        %1573 = vmatpush.msra.mxu0 0.0
        %1574 = vmatpush.msra.mxu0 0.0
        %1575 = vmatpush.msra.mxu0 %v1567
        %1576 = vmatpush.msra.mxu0 %v1566
        %1577 = vmatpush.msra.mxu0 %v1565
        %1578 = vmatpush.msra.mxu0 %v1564
        %1579 = vmatpush.msra.mxu0 %v1563
        %1580 = vmatpush.msra.mxu0 %v1562
        %1581 = vmatpush.msra.mxu0 %v1561
        %1582 = vmatpush.msra.mxu0 %v1560
        %1583 = vmatpush.msra.mxu0 %v1559
        %1584 = vmatpush.msra.mxu0 %v1558
        %1585 = vmatpush.msra.mxu0 %v1557
        %1586 = vmatpush.msra.mxu0 %v1556
        %1587 = vmatmul.f32.gmra.mxu0 %v1569
        %v1588 = vpop.f32.mrf.mxu0
        %v1589 = vadd.f32 0.0, %v1588
        %1590 = vdwg.mxu0
        %v1591 = vadd.f32 %v1554, %v1589
        %s1592 = scalar_lea.vmem [#allocation8], 192
        %v1593 = vld [vmem:[%s1592] sm:$0xff]
        %v1594 = vld [vmem:[%s1592 + $0x8] sm:$0xff]
        %v1595 = vld [vmem:[%s1592 + $0x10] sm:$0xff]
        %v1596 = vld [vmem:[%s1592 + $0x18] sm:$0xff]
        %v1597 = vld [vmem:[%s1592 + $0x20] sm:$0xff]
        %v1598 = vld [vmem:[%s1592 + $0x28] sm:$0xff]
        %v1599 = vld [vmem:[%s1592 + $0x30] sm:$0xff]
        %v1600 = vld [vmem:[%s1592 + $0x38] sm:$0xff]
        %v1601 = vld [vmem:[%s1592 + $0x40] sm:$0xff]
        %v1602 = vld [vmem:[%s1592 + $0x48] sm:$0xff]
        %v1603 = vld [vmem:[%s1592 + $0x50] sm:$0xff]
        %v1604 = vld [vmem:[%s1592 + $0x58] sm:$0xff]
        %v1605 = vrot.slane %v1515, 2
        %v1606 = vsel %vm1530, %v1605, 0
        %1608 = vmatpush.msra.mxu0 0.0
        %1609 = vmatpush.msra.mxu0 0.0
        %1610 = vmatpush.msra.mxu0 0.0
        %1611 = vmatpush.msra.mxu0 0.0
        %1612 = vmatpush.msra.mxu0 %v1604
        %1613 = vmatpush.msra.mxu0 %v1603
        %1614 = vmatpush.msra.mxu0 %v1602
        %1615 = vmatpush.msra.mxu0 %v1601
        %1616 = vmatpush.msra.mxu0 %v1600
        %1617 = vmatpush.msra.mxu0 %v1599
        %1618 = vmatpush.msra.mxu0 %v1598
        %1619 = vmatpush.msra.mxu0 %v1597
        %1620 = vmatpush.msra.mxu0 %v1596
        %1621 = vmatpush.msra.mxu0 %v1595
        %1622 = vmatpush.msra.mxu0 %v1594
        %1623 = vmatpush.msra.mxu0 %v1593
        %1624 = vmatmul.f32.gmra.mxu0 %v1606
        %v1625 = vpop.f32.mrf.mxu0
        %v1626 = vadd.f32 0.0, %v1625
        %1627 = vdwg.mxu0
        %v1628 = vadd.f32 %v1591, %v1626
        %s1629 = scalar_lea.vmem [#allocation8], 288
        %v1630 = vld [vmem:[%s1629] sm:$0xff]
        %v1631 = vld [vmem:[%s1629 + $0x8] sm:$0xff]
        %v1632 = vld [vmem:[%s1629 + $0x10] sm:$0xff]
        %v1633 = vld [vmem:[%s1629 + $0x18] sm:$0xff]
        %v1634 = vld [vmem:[%s1629 + $0x20] sm:$0xff]
        %v1635 = vld [vmem:[%s1629 + $0x28] sm:$0xff]
        %v1636 = vld [vmem:[%s1629 + $0x30] sm:$0xff]
        %v1637 = vld [vmem:[%s1629 + $0x38] sm:$0xff]
        %v1638 = vld [vmem:[%s1629 + $0x40] sm:$0xff]
        %v1639 = vld [vmem:[%s1629 + $0x48] sm:$0xff]
        %v1640 = vld [vmem:[%s1629 + $0x50] sm:$0xff]
        %v1641 = vld [vmem:[%s1629 + $0x58] sm:$0xff]
        %v1642 = vrot.slane %v1515, 3
        %v1643 = vsel %vm1530, %v1642, 0
        %1645 = vmatpush.msra.mxu0 0.0
        %1646 = vmatpush.msra.mxu0 0.0
        %1647 = vmatpush.msra.mxu0 0.0
        %1648 = vmatpush.msra.mxu0 0.0
        %1649 = vmatpush.msra.mxu0 %v1641
        %1650 = vmatpush.msra.mxu0 %v1640
        %1651 = vmatpush.msra.mxu0 %v1639
        %1652 = vmatpush.msra.mxu0 %v1638
        %1653 = vmatpush.msra.mxu0 %v1637
        %1654 = vmatpush.msra.mxu0 %v1636
        %1655 = vmatpush.msra.mxu0 %v1635
        %1656 = vmatpush.msra.mxu0 %v1634
        %1657 = vmatpush.msra.mxu0 %v1633
        %1658 = vmatpush.msra.mxu0 %v1632
        %1659 = vmatpush.msra.mxu0 %v1631
        %1660 = vmatpush.msra.mxu0 %v1630
        %1661 = vmatmul.f32.gmra.mxu0 %v1643
        %v1662 = vpop.f32.mrf.mxu0
        %v1663 = vadd.f32 0.0, %v1662
        %1664 = vdwg.mxu0
        %v1665 = vadd.f32 %v1628, %v1663
        %s1666 = scalar_lea.vmem [#allocation8], 384
        %v1667 = vld [vmem:[%s1666] sm:$0xff]
        %v1668 = vld [vmem:[%s1666 + $0x8] sm:$0xff]
        %v1669 = vld [vmem:[%s1666 + $0x10] sm:$0xff]
        %v1670 = vld [vmem:[%s1666 + $0x18] sm:$0xff]
        %v1671 = vld [vmem:[%s1666 + $0x20] sm:$0xff]
        %v1672 = vld [vmem:[%s1666 + $0x28] sm:$0xff]
        %v1673 = vld [vmem:[%s1666 + $0x30] sm:$0xff]
        %v1674 = vld [vmem:[%s1666 + $0x38] sm:$0xff]
        %v1675 = vld [vmem:[%s1666 + $0x40] sm:$0xff]
        %v1676 = vld [vmem:[%s1666 + $0x48] sm:$0xff]
        %v1677 = vld [vmem:[%s1666 + $0x50] sm:$0xff]
        %v1678 = vld [vmem:[%s1666 + $0x58] sm:$0xff]
        %v1679 = vrot.slane %v1515, 4
        %v1680 = vsel %vm1530, %v1679, 0
        %1682 = vmatpush.msra.mxu0 0.0
        %1683 = vmatpush.msra.mxu0 0.0
        %1684 = vmatpush.msra.mxu0 0.0
        %1685 = vmatpush.msra.mxu0 0.0
        %1686 = vmatpush.msra.mxu0 %v1678
        %1687 = vmatpush.msra.mxu0 %v1677
        %1688 = vmatpush.msra.mxu0 %v1676
        %1689 = vmatpush.msra.mxu0 %v1675
        %1690 = vmatpush.msra.mxu0 %v1674
        %1691 = vmatpush.msra.mxu0 %v1673
        %1692 = vmatpush.msra.mxu0 %v1672
        %1693 = vmatpush.msra.mxu0 %v1671
        %1694 = vmatpush.msra.mxu0 %v1670
        %1695 = vmatpush.msra.mxu0 %v1669
        %1696 = vmatpush.msra.mxu0 %v1668
        %1697 = vmatpush.msra.mxu0 %v1667
        %1698 = vmatmul.f32.gmra.mxu0 %v1680
        %v1699 = vpop.f32.mrf.mxu0
        %v1700 = vadd.f32 0.0, %v1699
        %1701 = vdwg.mxu0
        %v1702 = vadd.f32 %v1665, %v1700
        %s1703 = scalar_lea.vmem [#allocation8], 480
        %v1704 = vld [vmem:[%s1703] sm:$0xff]
        %v1705 = vld [vmem:[%s1703 + $0x8] sm:$0xff]
        %v1706 = vld [vmem:[%s1703 + $0x10] sm:$0xff]
        %v1707 = vld [vmem:[%s1703 + $0x18] sm:$0xff]
        %v1708 = vld [vmem:[%s1703 + $0x20] sm:$0xff]
        %v1709 = vld [vmem:[%s1703 + $0x28] sm:$0xff]
        %v1710 = vld [vmem:[%s1703 + $0x30] sm:$0xff]
        %v1711 = vld [vmem:[%s1703 + $0x38] sm:$0xff]
        %v1712 = vld [vmem:[%s1703 + $0x40] sm:$0xff]
        %v1713 = vld [vmem:[%s1703 + $0x48] sm:$0xff]
        %v1714 = vld [vmem:[%s1703 + $0x50] sm:$0xff]
        %v1715 = vld [vmem:[%s1703 + $0x58] sm:$0xff]
        %v1716 = vrot.slane %v1515, 5
        %v1717 = vsel %vm1530, %v1716, 0
        %1719 = vmatpush.msra.mxu0 0.0
        %1720 = vmatpush.msra.mxu0 0.0
        %1721 = vmatpush.msra.mxu0 0.0
        %1722 = vmatpush.msra.mxu0 0.0
        %1723 = vmatpush.msra.mxu0 %v1715
        %1724 = vmatpush.msra.mxu0 %v1714
        %1725 = vmatpush.msra.mxu0 %v1713
        %1726 = vmatpush.msra.mxu0 %v1712
        %1727 = vmatpush.msra.mxu0 %v1711
        %1728 = vmatpush.msra.mxu0 %v1710
        %1729 = vmatpush.msra.mxu0 %v1709
        %1730 = vmatpush.msra.mxu0 %v1708
        %1731 = vmatpush.msra.mxu0 %v1707
        %1732 = vmatpush.msra.mxu0 %v1706
        %1733 = vmatpush.msra.mxu0 %v1705
        %1734 = vmatpush.msra.mxu0 %v1704
        %1735 = vmatmul.f32.gmra.mxu0 %v1717
        %v1736 = vpop.f32.mrf.mxu0
        %v1737 = vadd.f32 0.0, %v1736
        %1738 = vdwg.mxu0
        %v1739 = vadd.f32 %v1702, %v1737
        %v1740 = vmax.f32 %v1739, 0.0
        %v1741 = vld [vmem:[%s11] sm:$0xff]
        %v1742 = vld [vmem:[%s11 + $0x8] sm:$0xff]
        %v1743 = vld [vmem:[%s11 + $0x10] sm:$0xff]
        %v1744 = vld [vmem:[%s11 + $0x18] sm:$0xff]
        %v1745 = vld [vmem:[%s11 + $0x20] sm:$0xff]
        %v1746 = vld [vmem:[%s11 + $0x28] sm:$0xff]
        %v1747 = vld [vmem:[%s11 + $0x30] sm:$0xff]
        %v1748 = vld [vmem:[%s11 + $0x38] sm:$0xff]
        %v1749 = vld [vmem:[%s11 + $0x40] sm:$0xff]
        %v1750 = vld [vmem:[%s11 + $0x48] sm:$0xff]
        %v1751 = vld [vmem:[%s11 + $0x50] sm:$0xff]
        %v1752 = vld [vmem:[%s11 + $0x58] sm:$0xff]
        %v1753 = vld [vmem:[%s11 + $0x60] sm:$0xff]
        %v1754 = vld [vmem:[%s11 + $0x68] sm:$0xff]
        %v1755 = vld [vmem:[%s11 + $0x70] sm:$0xff]
        %v1756 = vld [vmem:[#allocation11] sm:$0x1]
        %vm1757 = vcmask 982016
        %v1759 = vsel %vm1757, %v1740, 0
        %1761 = vmatpush.msra.mxu0 0.0
        %1762 = vmatpush.msra.mxu0 %v1755
        %1763 = vmatpush.msra.mxu0 %v1754
        %1764 = vmatpush.msra.mxu0 %v1753
        %1765 = vmatpush.msra.mxu0 %v1752
        %1766 = vmatpush.msra.mxu0 %v1751
        %1767 = vmatpush.msra.mxu0 %v1750
        %1768 = vmatpush.msra.mxu0 %v1749
        %1769 = vmatpush.msra.mxu0 %v1748
        %1770 = vmatpush.msra.mxu0 %v1747
        %1771 = vmatpush.msra.mxu0 %v1746
        %1772 = vmatpush.msra.mxu0 %v1745
        %1773 = vmatpush.msra.mxu0 %v1744
        %1774 = vmatpush.msra.mxu0 %v1743
        %1775 = vmatpush.msra.mxu0 %v1742
        %1776 = vmatpush.msra.mxu0 %v1741
        %1777 = vmatmul.f32.gmra.mxu0 %v1759
        %v1778 = vpop.f32.mrf.mxu0
        %v1779 = vadd.f32 %v1756, %v1778
        %1780 = vdwg.mxu0
        %v1781 = vmax.f32 %v1779, 0.0
        %v1782 = vld [vmem:[%s13] sm:$0xff]
        %v1783 = vld [vmem:[%s13 + $0x8] sm:$0xff]
        %v1784 = vld [vmem:[%s13 + $0x10] sm:$0xff]
        %v1785 = vld [vmem:[%s13 + $0x18] sm:$0xff]
        %v1786 = vld [vmem:[%s13 + $0x20] sm:$0xff]
        %v1787 = vld [vmem:[%s13 + $0x28] sm:$0xff]
        %v1788 = vld [vmem:[%s13 + $0x30] sm:$0xff]
        %v1789 = vld [vmem:[%s13 + $0x38] sm:$0xff]
        %v1790 = vld [vmem:[%s13 + $0x40] sm:$0xff]
        %v1791 = vld [vmem:[%s13 + $0x48] sm:$0xff]
        %v1792 = vld [vmem:[%s13 + $0x50] sm:$0xf]
        %v1793 = vld [vmem:[#allocation13] sm:$0x1]
        %vm1794 = vcmask 687104
        %v1796 = vsel %vm1794, %v1781, 0
        %v1799 = vsel %vm1493, %v1792, 0
        %1801 = vmatpush.msra.mxu0 0.0
        %1802 = vmatpush.msra.mxu0 0.0
        %1803 = vmatpush.msra.mxu0 0.0
        %1804 = vmatpush.msra.mxu0 0.0
        %1805 = vmatpush.msra.mxu0 0.0
        %1806 = vmatpush.msra.mxu0 %v1799
        %1807 = vmatpush.msra.mxu0 %v1791
        %1808 = vmatpush.msra.mxu0 %v1790
        %1809 = vmatpush.msra.mxu0 %v1789
        %1810 = vmatpush.msra.mxu0 %v1788
        %1811 = vmatpush.msra.mxu0 %v1787
        %1812 = vmatpush.msra.mxu0 %v1786
        %1813 = vmatpush.msra.mxu0 %v1785
        %1814 = vmatpush.msra.mxu0 %v1784
        %1815 = vmatpush.msra.mxu0 %v1783
        %1816 = vmatpush.msra.mxu0 %v1782
        %1817 = vmatmul.f32.gmra.mxu0 %v1796
        %v1818 = vpop.f32.mrf.mxu0
        %v1819 = vadd.f32 %v1793, %v1818
        %1820 = vdwg.mxu0
        %vm1821 = vcmask 73728
        %1822 = vst.msk [vmem:[%s594] sm:$0x1] %vm1821, %v1819
        %s1823 = sand.u32 %s361, 1
        %s1824 = scalar_lea.sflag [#allocation4], %s1823
        %s1825 = sand.u32 %s361, 1
        %s1826 = scalar_lea.vmem [#allocation14], %s1825
        // Predicated region
        $region109: #{net_forward.1} parent=79 // pred_check
          %p1827 = pneg %p371
        $region110: #{net_forward.1} parent=79 // pred_check_branch
          %1829 = sbr.rel (%p1827) target = $region112
        $region111: #{net_forward.1} parent=79 // pred_region
          %1831 = vsyncadd %s1824, 0
          %s1832 = scalar_lea.hbm %s15, %s33
          %s1834 = sshll.u32 %s1826, 4
          %s1835 = int_to_ptr.vmem [resolvable:$true] %s1834
          %s1836 = sshll.u32 %s1832, 4
          %s1837 = int_to_ptr.hbm [resolvable:$true] %s1836
          %1839 = dma.vmem_to_hbm [thread:$0]  %s1835, 16, %s1837, %s1824
        $region112: #{net_forward.1} parent=79 // pred_fallthru
          _
      $region80: #{net_forward.1} parent=5 // pred_fallthru
        _
      %p1840 = scmp.le.s32.totalorder 2, %s28
      // Predicated region
      $region113: #{net_forward.1} parent=5 // pred_check
        %p1841 = pneg %p1840
      $region114: #{net_forward.1} parent=5 // pred_check_branch
        %1843 = sbr.rel (%p1841) target = $region116
      $region115: #{net_forward.1} parent=5 // pred_region
        %s1844 = ssub.s32 %s28, 2
        // Predicated region
        $region117: #{net_forward.1} parent=115 // pred_check
          %p1845 = pneg %p377
        $region118: #{net_forward.1} parent=115 // pred_check_branch
          %1847 = sbr.rel (%p1845) target = $region120
        $region119: #{net_forward.1} parent=115 // pred_region
          %s1848 = sand.u32 %s362, 1
          %s1849 = scalar_lea.sflag [#allocation4], %s1848
          %s1850 = sand.u32 %s362, 1
          %s1851 = scalar_lea.vmem [#allocation14], %s1850
          %1853 = dma.done %s1849, 16
        $region120: #{net_forward.1} parent=115 // pred_fallthru
          _
      $region116: #{net_forward.1} parent=5 // pred_fallthru
        _
    $region6: #{net_forward.1} parent=1 // loop_footer
      %s32 = sadd.s32 1, %s28
    $region7: #{net_forward.1} parent=1 // loop_footer_branch
      %27 = sbr.rel target = $region3
    $region8: #{net_forward.1} parent=1 // loop_exit
      _
    %1854 = vsyncpa [#allocation3], 1
    %s1855 = scalar_lea.sflag [#allocation3], 1
    %1856 = vsyncpa %s1855, 1
    %1857 = vsyncpa [#allocation6], 1
    %1858 = vsyncpa [#allocation9], 1
    %1859 = vsyncpa [#allocation12], 1
    %1860 = vsyncpa [#allocation4], 1
    %s1861 = scalar_lea.sflag [#allocation4], 1
    %1862 = vsyncpa %s1861, 1

</llo_original>
